<compile_context>
chip_gen: v5e
topology: v5e:2x2
jax: 0.10.0
libtpu: 0.0.40
codegen_flags: <defaults>
</compile_context>

<pallas_src>
import math
from functools import partial

import jax
import jax.numpy as jnp
from jax import lax
from jax.experimental import pallas as pl
from jax.experimental.pallas import tpu as pltpu

_PARALLEL_B = pltpu.CompilerParams(dimension_semantics=("parallel",))


# ----------------------------- Pallas kernels ------------------------------

def _pre_forward_kernel(d_ref, n_ref, wd_ref, bd_ref, wn_ref, bn_ref,
                        wqkv_ref, mw_ref, mb_ref, g1_ref, b1_ref,
                        w1_ref, bf1_ref, w2_ref, bf2_ref, g2_ref, b2_ref,
                        wkv_ref, enc_ref, kv_ref,
                        *, head_num, qkv_dim, layer_num, inv_sqrt_d):
    # --- initial embeddings: depot (1,2)->(1,E), nodes (n,3)->(n,E), concat ---
    emb_d = lax.dot_general(d_ref[0], wd_ref[...], (((1,), (1,)), ((), ())),
                            preferred_element_type=jnp.float32) + bd_ref[...]
    emb_n = lax.dot_general(n_ref[0], wn_ref[...], (((1,), (1,)), ((), ())),
                            preferred_element_type=jnp.float32) + bn_ref[...]
    x = jnp.concatenate([emb_d, emb_n], axis=0)                  # (S, E)
    hd = head_num * qkv_dim

    # --- encoder layers, fully fused, intermediates never leave VMEM ---
    for l in range(layer_num):
        # single QKV matmul with concatenated [Wq | Wk | Wv]  -> (S, 3*H*d)
        qkv = lax.dot_general(x, wqkv_ref[l], (((1,), (1,)), ((), ())),
                              preferred_element_type=jnp.float32)

        # per-head attention (no mask in encoder), 2-D MXU matmuls only
        outs = []
        for h in range(head_num):
            qh = qkv[:, h * qkv_dim:(h + 1) * qkv_dim]                 # (S, d)
            kh = qkv[:, hd + h * qkv_dim:hd + (h + 1) * qkv_dim]       # (S, d)
            vh = qkv[:, 2 * hd + h * qkv_dim:2 * hd + (h + 1) * qkv_dim]
            sc = lax.dot_general(qh, kh, (((1,), (1,)), ((), ())),
                                 preferred_element_type=jnp.float32) * inv_sqrt_d
            mx = jnp.max(sc, axis=-1, keepdims=True)
            p = jnp.exp(sc - mx)
            w = p * pl.reciprocal(jnp.sum(p, axis=-1, keepdims=True), approx=True)
            outs.append(jnp.dot(w, vh, preferred_element_type=jnp.float32))
        out_concat = jnp.concatenate(outs, axis=1)               # (S, H*d)

        # multi_head_combine
        mh = lax.dot_general(out_concat, mw_ref[l], (((1,), (1,)), ((), ())),
                             preferred_element_type=jnp.float32) + mb_ref[l]

        # add & instance-norm 1 (per-channel over nodes, biased var, eps=1e-5)
        add1 = x + mh
        mean1 = jnp.mean(add1, axis=0, keepdims=True)
        var1 = jnp.mean((add1 - mean1) ** 2, axis=0, keepdims=True)
        out1 = (add1 - mean1) * lax.rsqrt(var1 + 1e-5) * g1_ref[l] + b1_ref[l]

        # feed forward: W2(relu(W1(out1)))
        hid = lax.dot_general(out1, w1_ref[l], (((1,), (1,)), ((), ())),
                              preferred_element_type=jnp.float32) + bf1_ref[l]
        hid = jnp.maximum(hid, 0.0)
        out2 = lax.dot_general(hid, w2_ref[l], (((1,), (1,)), ((), ())),
                               preferred_element_type=jnp.float32) + bf2_ref[l]

        # add & instance-norm 2
        add2 = out1 + out2
        mean2 = jnp.mean(add2, axis=0, keepdims=True)
        var2 = jnp.mean((add2 - mean2) ** 2, axis=0, keepdims=True)
        x = (add2 - mean2) * lax.rsqrt(var2 + 1e-5) * g2_ref[l] + b2_ref[l]

    enc_ref[0] = x                                               # encoded nodes
    # decoder.set_kv fused here: concatenated [Wk | Wv] -> (S, 2*H*d)
    kv_ref[0] = lax.dot_general(x, wkv_ref[...], (((1,), (1,)), ((), ())),
                                preferred_element_type=jnp.float32)


def _decoder_kernel(cur_ref, load_ref, mask_ref, enc_ref, kv_ref,
                    wqe_ref, wql_ref, mw_ref, mb_ref, o_ref,
                    *, head_num, qkv_dim, inv_sqrt_d, inv_sqrt_e, clip):
    enc = enc_ref[0]                                             # (S, E)
    S = enc.shape[0]
    cur = cur_ref[0]                                             # (P, 1) int32
    P = cur.shape[0]
    hd = head_num * qkv_dim

    # in-kernel gather of encoded_last_node via one-hot matmul
    col_ids = lax.broadcasted_iota(jnp.int32, (P, S), 1)
    onehot = (col_ids == cur).astype(jnp.float32)                # (P, S)
    last = jnp.dot(onehot, enc, preferred_element_type=jnp.float32)   # (P, E)

    # Wq_last([last, load]) split as last @ W[:, :E].T + load ⊗ W[:, E]
    q = lax.dot_general(last, wqe_ref[...], (((1,), (1,)), ((), ())),
                        preferred_element_type=jnp.float32)
    q = q + jnp.dot(load_ref[0], wql_ref[...], preferred_element_type=jnp.float32)

    kv = kv_ref[0]                                               # (S, 2*H*d)
    mask = mask_ref[0]                                           # (P, S)

    # per-head masked attention
    outs = []
    for h in range(head_num):
        qh = q[:, h * qkv_dim:(h + 1) * qkv_dim]                 # (P, d)
        kh = kv[:, h * qkv_dim:(h + 1) * qkv_dim]                # (S, d)
        vh = kv[:, hd + h * qkv_dim:hd + (h + 1) * qkv_dim]      # (S, d)
        sc = lax.dot_general(qh, kh, (((1,), (1,)), ((), ())),
                             preferred_element_type=jnp.float32) * inv_sqrt_d
        sc = sc + mask
        mx = jnp.max(sc, axis=-1, keepdims=True)
        p = jnp.exp(sc - mx)
        w = p * pl.reciprocal(jnp.sum(p, axis=-1, keepdims=True), approx=True)
        outs.append(jnp.dot(w, vh, preferred_element_type=jnp.float32))
    out_concat = jnp.concatenate(outs, axis=1)                   # (P, H*d)

    # multi_head_combine
    mh = lax.dot_general(out_concat, mw_ref[...], (((1,), (1,)), ((), ())),
                         preferred_element_type=jnp.float32) + mb_ref[...]

    # single-head scoring directly against encoded_nodes (no HBM transpose)
    sc2 = lax.dot_general(mh, enc, (((1,), (1,)), ((), ())),
                          preferred_element_type=jnp.float32)    # (P, S)
    sc2 = clip * jnp.tanh(sc2 * inv_sqrt_e) + mask
    mx2 = jnp.max(sc2, axis=-1, keepdims=True)
    p2 = jnp.exp(sc2 - mx2)
    # NOTE: rows that are fully masked (all -inf) would produce NaNs; the CVRP
    # rollout guarantees at least one feasible node (depot) per row.
    o_ref[0] = p2 * pl.reciprocal(jnp.sum(p2, axis=-1, keepdims=True), approx=True)


# ------------------------------ wrappers ------------------------------------

def pre_forward(params, mp, depot_xy, node_xy, node_demand):
    E, H, d, L = mp['embedding_dim'], mp['head_num'], mp['qkv_dim'], mp['encoder_layer_num']
    F_dim = mp['ff_hidden_dim']
    hd = H * d
    B = depot_xy.shape[0]
    n = node_xy.shape[1]
    S = n + 1

    node_xy_demand = jnp.concatenate([node_xy, node_demand[:, :, None]], axis=2)

    # stack per-layer weights along a leading L axis (one-time host-side prep)
    layers = params['layers']
    wqkv_all = jnp.stack([jnp.concatenate([lp['Wq'], lp['Wk'], lp['Wv']], axis=0)
                          for lp in layers])                      # (L, 3*H*d, E)
    mw_all = jnp.stack([lp['mhc_w'] for lp in layers])            # (L, E, H*d)
    mb_all = jnp.stack([lp['mhc_b'].reshape(1, E) for lp in layers])
    g1_all = jnp.stack([lp['n1_g'].reshape(1, E) for lp in layers])
    b1_all = jnp.stack([lp['n1_b'].reshape(1, E) for lp in layers])
    w1_all = jnp.stack([lp['ff_w1'] for lp in layers])            # (L, F, E)
    bf1_all = jnp.stack([lp['ff_b1'].reshape(1, F_dim) for lp in layers])
    w2_all = jnp.stack([lp['ff_w2'] for lp in layers])            # (L, E, F)
    bf2_all = jnp.stack([lp['ff_b2'].reshape(1, E) for lp in layers])
    g2_all = jnp.stack([lp['n2_g'].reshape(1, E) for lp in layers])
    b2_all = jnp.stack([lp['n2_b'].reshape(1, E) for lp in layers])
    wkv = jnp.concatenate([params['dec_Wk'], params['dec_Wv']], axis=0)   # (2*H*d, E)

    kern = partial(_pre_forward_kernel, head_num=H, qkv_dim=d, layer_num=L,
                   inv_sqrt_d=1.0 / math.sqrt(d))

    full3 = lambda b: (0, 0, 0)
    full2 = lambda b: (0, 0)

    encoded_nodes, kv = pl.pallas_call(
        kern,
        out_shape=(jax.ShapeDtypeStruct((B, S, E), jnp.float32),
                   jax.ShapeDtypeStruct((B, S, 2 * hd), jnp.float32)),
        grid=(B,),
        in_specs=[
            pl.BlockSpec((1, 1, 2), lambda b: (b, 0, 0)),         # depot xy
            pl.BlockSpec((1, n, 3), lambda b: (b, 0, 0)),         # node xy+demand
            pl.BlockSpec((E, 2), full2),                          # embed depot W
            pl.BlockSpec((1, E), full2),                          # embed depot b
            pl.BlockSpec((E, 3), full2),                          # embed node W
            pl.BlockSpec((1, E), full2),                          # embed node b
            pl.BlockSpec((L, 3 * hd, E), full3),                  # [Wq|Wk|Wv] per layer
            pl.BlockSpec((L, E, hd), full3),                      # multi_head_combine W
            pl.BlockSpec((L, 1, E), full3),                       # multi_head_combine b
            pl.BlockSpec((L, 1, E), full3),                       # norm1 gamma
            pl.BlockSpec((L, 1, E), full3),                       # norm1 beta
            pl.BlockSpec((L, F_dim, E), full3),                   # ff W1
            pl.BlockSpec((L, 1, F_dim), full3),                   # ff b1
            pl.BlockSpec((L, E, F_dim), full3),                   # ff W2
            pl.BlockSpec((L, 1, E), full3),                       # ff b2
            pl.BlockSpec((L, 1, E), full3),                       # norm2 gamma
            pl.BlockSpec((L, 1, E), full3),                       # norm2 beta
            pl.BlockSpec((2 * hd, E), full2),                     # decoder [Wk|Wv]
        ],
        out_specs=(pl.BlockSpec((1, S, E), lambda b: (b, 0, 0)),
                   pl.BlockSpec((1, S, 2 * hd), lambda b: (b, 0, 0))),
        compiler_params=_PARALLEL_B,
    )(depot_xy, node_xy_demand,
      params['emb_depot_w'], params['emb_depot_b'].reshape(1, E),
      params['emb_node_w'], params['emb_node_b'].reshape(1, E),
      wqkv_all, mw_all, mb_all, g1_all, b1_all,
      w1_all, bf1_all, w2_all, bf2_all, g2_all, b2_all, wkv)

    # precompute decoder-step weight views once (outside the per-step path)
    dec = {
        'kv': kv,
        'wq_e': params['dec_Wq_last'][:, :E],                    # (H*d, E)
        'wq_l': jnp.transpose(params['dec_Wq_last'][:, E:]),     # (1, H*d)
        'mhc_w': params['dec_mhc_w'],
        'mhc_b': params['dec_mhc_b'].reshape(1, E),
    }
    return encoded_nodes, dec


def decoder_step(mp, encoded_nodes, dec, current_node, load, ninf_mask):
    B, S, E = encoded_nodes.shape
    P = current_node.shape[1]
    H, d = mp['head_num'], mp['qkv_dim']
    hd = H * d
    kern = partial(_decoder_kernel, head_num=H, qkv_dim=d,
                   inv_sqrt_d=1.0 / math.sqrt(d),
                   inv_sqrt_e=1.0 / mp['sqrt_embedding_dim'],
                   clip=mp['logit_clipping'])
    return pl.pallas_call(
        kern,
        out_shape=jax.ShapeDtypeStruct((B, P, S), jnp.float32),
        grid=(B,),
        in_specs=[
            pl.BlockSpec((1, P, 1), lambda b: (b, 0, 0)),        # current node (int32)
            pl.BlockSpec((1, P, 1), lambda b: (b, 0, 0)),        # load
            pl.BlockSpec((1, P, S), lambda b: (b, 0, 0)),        # ninf mask
            pl.BlockSpec((1, S, E), lambda b: (b, 0, 0)),        # encoded nodes
            pl.BlockSpec((1, S, 2 * hd), lambda b: (b, 0, 0)),   # cached [K | V]
            pl.BlockSpec((hd, E), lambda b: (0, 0)),             # Wq_last[:, :E]
            pl.BlockSpec((1, hd), lambda b: (0, 0)),             # Wq_last[:, E]
            pl.BlockSpec((E, hd), lambda b: (0, 0)),             # multi_head_combine W
            pl.BlockSpec((1, E), lambda b: (0, 0)),              # multi_head_combine b
        ],
        out_specs=pl.BlockSpec((1, P, S), lambda b: (b, 0, 0)),
        compiler_params=_PARALLEL_B,
    )(current_node.reshape(B, P, 1).astype(jnp.int32),
      load.reshape(B, P, 1).astype(jnp.float32),
      ninf_mask, encoded_nodes, dec['kv'],
      dec['wq_e'], dec['wq_l'], dec['mhc_w'], dec['mhc_b'])


# ------------------------------ model glue -----------------------------------

def model_forward(params, mp, encoded_nodes, dec, state, return_probs=False):
    B, P = state['BATCH_IDX'].shape
    S = encoded_nodes.shape[1]
    if state['selected_count'] == 0:
        selected = jnp.zeros((B, P), jnp.int32)
        prob = jnp.ones((B, P), jnp.float32)
        probs = jnp.ones((B, P, S), jnp.float32)
    elif state['selected_count'] == 1:
        selected = jnp.broadcast_to(jnp.arange(1, P + 1, dtype=jnp.int32)[None, :], (B, P))
        prob = jnp.ones((B, P), jnp.float32)
        probs = jnp.ones((B, P, S), jnp.float32)
    else:
        probs = decoder_step(mp, encoded_nodes, dec,
                             state['current_node'], state['load'], state['ninf_mask'])
        # eval_type == 'argmax' (greedy); argmax of a softmax row with at least
        # one unmasked entry always has prob > 0, so no resample loop needed.
        # TODO(synk): 'softmax' eval_type (multinomial sampling + resample-while-prob==0) not ported.
        selected = jnp.argmax(probs, axis=2).astype(jnp.int32)
        prob = probs[state['BATCH_IDX'], state['POMO_IDX'], selected].reshape(B, P)
    if return_probs:
        return selected, prob, probs
    return selected, prob


# ---------------------------- parameter init --------------------------------

def init_params(key, E, H, d, F, L):
    keys = iter(jax.random.split(key, 64 + 16 * L))

    def nrm(shape, scale=0.1):
        return (scale * jax.random.normal(next(keys), shape)).astype(jnp.float32)

    params = {
        'emb_depot_w': nrm((E, 2)), 'emb_depot_b': nrm((E,)),
        'emb_node_w': nrm((E, 3)), 'emb_node_b': nrm((E,)),
        'dec_Wq_last': nrm((H * d, E + 1)),
        'dec_Wk': nrm((H * d, E)),
        'dec_Wv': nrm((H * d, E)),
        'dec_mhc_w': nrm((E, H * d)), 'dec_mhc_b': nrm((E,)),
        'layers': [],
    }
    for _ in range(L):
        params['layers'].append({
            'Wq': nrm((H * d, E)),
            'Wk': nrm((H * d, E)),
            'Wv': nrm((H * d, E)),
            'mhc_w': nrm((E, H * d)), 'mhc_b': nrm((E,)),
            'n1_g': jnp.ones((E,), jnp.float32), 'n1_b': jnp.zeros((E,), jnp.float32),
            'ff_w1': nrm((F, E)), 'ff_b1': nrm((F,)),
            'ff_w2': nrm((E, F)), 'ff_b2': nrm((E,)),
            'n2_g': jnp.ones((E,), jnp.float32), 'n2_b': jnp.zeros((E,), jnp.float32),
        })
    return params


# --------------------------------- main --------------------------------------

if __name__ == "__main__":
    E, H, d, F, L = 32, 4, 8, 64, 2
    mp = {
        'embedding_dim': E, 'head_num': H, 'qkv_dim': d, 'ff_hidden_dim': F,
        'encoder_layer_num': L, 'sqrt_embedding_dim': math.sqrt(E),
        'logit_clipping': 10.0, 'norm': 'instance', 'eval_type': 'argmax',
    }
    B, n_cust = 2, 7
    S = n_cust + 1          # depot + customers
    P = 8                   # pomo size

    root = jax.random.PRNGKey(0)
    kp, kd, kn, kq, kc, kl, km = jax.random.split(root, 7)

    params = init_params(kp, E, H, d, F, L)

    depot_xy = jax.random.uniform(kd, (B, 1, 2), jnp.float32)
    node_xy = jax.random.uniform(kn, (B, n_cust, 2), jnp.float32)
    node_demand = jax.random.uniform(kq, (B, n_cust), jnp.float32)

    encoded_nodes, dec = pre_forward(params, mp, depot_xy, node_xy, node_demand)

    current_node = jax.random.randint(kc, (B, P), 0, S).astype(jnp.int32)
    load = jax.random.uniform(kl, (B, P), jnp.float32)
    mask_bool = jax.random.bernoulli(km, 0.3, (B, P, S))
    mask_bool = mask_bool.at[:, :, 0].set(False)   # keep depot reachable (no all -inf rows)
    ninf_mask = jnp.where(mask_bool, -jnp.inf, 0.0).astype(jnp.float32)

    state = {
        'BATCH_IDX': jnp.broadcast_to(jnp.arange(B)[:, None], (B, P)),
        'POMO_IDX': jnp.broadcast_to(jnp.arange(P)[None, :], (B, P)),
        'selected_count': 2,
        'current_node': current_node,
        'load': load,
        'ninf_mask': ninf_mask,
    }

    selected, prob, probs = model_forward(params, mp, encoded_nodes, dec,
                                          state, return_probs=True)
    jax.block_until_ready((selected, prob, probs))
    assert probs.shape == (B, P, S) and prob.shape == (B, P) and selected.shape == (B, P)
    assert bool(jnp.all(jnp.isfinite(probs)))
    print("KERNEL_OK")
</pallas_src>

<mosaic_0001>
module attributes {stable_mosaic.version = 11 : i64} {
  func.func @_pre_forward_kernel(%arg0: i32, %arg1: memref<1x1x2xf32, #tpu.memory_space<vmem>>, %arg2: memref<1x7x3xf32, #tpu.memory_space<vmem>>, %arg3: memref<32x2xf32, #tpu.memory_space<vmem>>, %arg4: memref<1x32xf32, #tpu.memory_space<vmem>>, %arg5: memref<32x3xf32, #tpu.memory_space<vmem>>, %arg6: memref<1x32xf32, #tpu.memory_space<vmem>>, %arg7: memref<2x96x32xf32, #tpu.memory_space<vmem>>, %arg8: memref<2x32x32xf32, #tpu.memory_space<vmem>>, %arg9: memref<2x1x32xf32, #tpu.memory_space<vmem>>, %arg10: memref<2x1x32xf32, #tpu.memory_space<vmem>>, %arg11: memref<2x1x32xf32, #tpu.memory_space<vmem>>, %arg12: memref<2x64x32xf32, #tpu.memory_space<vmem>>, %arg13: memref<2x1x64xf32, #tpu.memory_space<vmem>>, %arg14: memref<2x32x64xf32, #tpu.memory_space<vmem>>, %arg15: memref<2x1x32xf32, #tpu.memory_space<vmem>>, %arg16: memref<2x1x32xf32, #tpu.memory_space<vmem>>, %arg17: memref<2x1x32xf32, #tpu.memory_space<vmem>>, %arg18: memref<64x32xf32, #tpu.memory_space<vmem>>, %arg19: memref<1x8x32xf32, #tpu.memory_space<vmem>>, %arg20: memref<1x8x64xf32, #tpu.memory_space<vmem>>) attributes {dimension_semantics = [#tpu.dimension_semantics<parallel>], iteration_bounds = array<i64: 2>, scalar_prefetch = 0 : i64, scratch_operands = 0 : i64, tpu.core_type = #tpu.core_type<tc>, window_params = [{transform_indices = @transform_0, window_bounds = array<i64: 1, 1, 2>}, {transform_indices = @transform_1, window_bounds = array<i64: 1, 7, 3>}, {pipeline_mode = #tpu.pipeline_mode<synchronous>, transform_indices = @transform_2, window_bounds = array<i64: 32, 2>}, {pipeline_mode = #tpu.pipeline_mode<synchronous>, transform_indices = @transform_3, window_bounds = array<i64: 1, 32>}, {pipeline_mode = #tpu.pipeline_mode<synchronous>, transform_indices = @transform_4, window_bounds = array<i64: 32, 3>}, {pipeline_mode = #tpu.pipeline_mode<synchronous>, transform_indices = @transform_5, window_bounds = array<i64: 1, 32>}, {pipeline_mode = #tpu.pipeline_mode<synchronous>, transform_indices = @transform_6, window_bounds = array<i64: 2, 96, 32>}, {pipeline_mode = #tpu.pipeline_mode<synchronous>, transform_indices = @transform_7, window_bounds = array<i64: 2, 32, 32>}, {pipeline_mode = #tpu.pipeline_mode<synchronous>, transform_indices = @transform_8, window_bounds = array<i64: 2, 1, 32>}, {pipeline_mode = #tpu.pipeline_mode<synchronous>, transform_indices = @transform_9, window_bounds = array<i64: 2, 1, 32>}, {pipeline_mode = #tpu.pipeline_mode<synchronous>, transform_indices = @transform_10, window_bounds = array<i64: 2, 1, 32>}, {pipeline_mode = #tpu.pipeline_mode<synchronous>, transform_indices = @transform_11, window_bounds = array<i64: 2, 64, 32>}, {pipeline_mode = #tpu.pipeline_mode<synchronous>, transform_indices = @transform_12, window_bounds = array<i64: 2, 1, 64>}, {pipeline_mode = #tpu.pipeline_mode<synchronous>, transform_indices = @transform_13, window_bounds = array<i64: 2, 32, 64>}, {pipeline_mode = #tpu.pipeline_mode<synchronous>, transform_indices = @transform_14, window_bounds = array<i64: 2, 1, 32>}, {pipeline_mode = #tpu.pipeline_mode<synchronous>, transform_indices = @transform_15, window_bounds = array<i64: 2, 1, 32>}, {pipeline_mode = #tpu.pipeline_mode<synchronous>, transform_indices = @transform_16, window_bounds = array<i64: 2, 1, 32>}, {pipeline_mode = #tpu.pipeline_mode<synchronous>, transform_indices = @transform_17, window_bounds = array<i64: 64, 32>}, {transform_indices = @transform_18, window_bounds = array<i64: 1, 8, 32>}, {transform_indices = @transform_19, window_bounds = array<i64: 1, 8, 64>}]} {
    %c0 = arith.constant 0 : index
    %c0_0 = arith.constant 0 : index
    %c0_1 = arith.constant 0 : index
    %0 = vector.load %arg1[%c0, %c0_0, %c0_1] : memref<1x1x2xf32, #tpu.memory_space<vmem>>, vector<1x1x2xf32>
    %1 = vector.shape_cast %0 : vector<1x1x2xf32> to vector<1x2xf32>
    %c0_2 = arith.constant 0 : index
    %c0_3 = arith.constant 0 : index
    %2 = vector.load %arg3[%c0_2, %c0_3] : memref<32x2xf32, #tpu.memory_space<vmem>>, vector<32x2xf32>
    %cst = arith.constant dense<0.000000e+00> : vector<1x32xf32>
    %3 = tpu.matmul %1, %2, %cst {dimension_numbers = #tpu.dot_dimension_numbers<[1], [1], [0], [0], [0, 0, 1, 0], [], []>} : vector<1x2xf32>, vector<32x2xf32>, vector<1x32xf32> -> vector<1x32xf32>
    %c0_4 = arith.constant 0 : index
    %c0_5 = arith.constant 0 : index
    %4 = vector.load %arg4[%c0_4, %c0_5] : memref<1x32xf32, #tpu.memory_space<vmem>>, vector<1x32xf32>
    %5 = arith.addf %3, %4 : vector<1x32xf32>
    %c0_6 = arith.constant 0 : index
    %c0_7 = arith.constant 0 : index
    %c0_8 = arith.constant 0 : index
    %6 = vector.load %arg2[%c0_6, %c0_7, %c0_8] : memref<1x7x3xf32, #tpu.memory_space<vmem>>, vector<1x7x3xf32>
    %7 = vector.shape_cast %6 : vector<1x7x3xf32> to vector<7x3xf32>
    %c0_9 = arith.constant 0 : index
    %c0_10 = arith.constant 0 : index
    %8 = vector.load %arg5[%c0_9, %c0_10] : memref<32x3xf32, #tpu.memory_space<vmem>>, vector<32x3xf32>
    %cst_11 = arith.constant dense<0.000000e+00> : vector<7x32xf32>
    %9 = tpu.matmul %7, %8, %cst_11 {dimension_numbers = #tpu.dot_dimension_numbers<[1], [1], [0], [0], [0, 0, 1, 0], [], []>} : vector<7x3xf32>, vector<32x3xf32>, vector<7x32xf32> -> vector<7x32xf32>
    %c0_12 = arith.constant 0 : index
    %c0_13 = arith.constant 0 : index
    %10 = vector.load %arg6[%c0_12, %c0_13] : memref<1x32xf32, #tpu.memory_space<vmem>>, vector<1x32xf32>
    %11 = vector.broadcast %10 : vector<1x32xf32> to vector<7x32xf32>
    %12 = arith.addf %9, %11 : vector<7x32xf32>
    %13 = tpu.concatenate %5, %12 in 0 : vector<1x32xf32>, vector<7x32xf32> -> vector<8x32xf32>
    %c0_14 = arith.constant 0 : index
    %c0_15 = arith.constant 0 : index
    %c0_16 = arith.constant 0 : index
    %14 = vector.load %arg7[%c0_14, %c0_15, %c0_16] : memref<2x96x32xf32, #tpu.memory_space<vmem>>, vector<1x96x32xf32>
    %15 = vector.shape_cast %14 : vector<1x96x32xf32> to vector<96x32xf32>
    %cst_17 = arith.constant dense<0.000000e+00> : vector<8x96xf32>
    %16 = tpu.matmul %13, %15, %cst_17 {dimension_numbers = #tpu.dot_dimension_numbers<[1], [1], [0], [0], [0, 0, 1, 0], [], []>} : vector<8x32xf32>, vector<96x32xf32>, vector<8x96xf32> -> vector<8x96xf32>
    %17 = vector.extract_strided_slice %16 {offsets = [0, 0], sizes = [8, 8], strides = [1, 1]} : vector<8x96xf32> to vector<8x8xf32>
    %18 = vector.extract_strided_slice %16 {offsets = [0, 32], sizes = [8, 8], strides = [1, 1]} : vector<8x96xf32> to vector<8x8xf32>
    %19 = vector.extract_strided_slice %16 {offsets = [0, 64], sizes = [8, 8], strides = [1, 1]} : vector<8x96xf32> to vector<8x8xf32>
    %cst_18 = arith.constant dense<0.000000e+00> : vector<8x8xf32>
    %20 = tpu.matmul %17, %18, %cst_18 {dimension_numbers = #tpu.dot_dimension_numbers<[1], [1], [0], [0], [0, 0, 1, 0], [], []>} : vector<8x8xf32>, vector<8x8xf32>, vector<8x8xf32> -> vector<8x8xf32>
    %cst_19 = arith.constant 0.353553385 : f32
    %21 = vector.broadcast %cst_19 : f32 to vector<8x8xf32>
    %22 = arith.mulf %20, %21 : vector<8x8xf32>
    %cst_20 = arith.constant dense<0xFF800000> : vector<8xf32>
    %23 = vector.multi_reduction <maximumf>, %22, %cst_20 [1] : vector<8x8xf32> to vector<8xf32>
    %24 = vector.shape_cast %23 : vector<8xf32> to vector<8x1xf32>
    %25 = vector.broadcast %24 : vector<8x1xf32> to vector<8x8xf32>
    %26 = arith.subf %22, %25 : vector<8x8xf32>
    %27 = math.exp %26 : vector<8x8xf32>
    %cst_21 = arith.constant dense<0.000000e+00> : vector<8xf32>
    %28 = vector.multi_reduction <add>, %27, %cst_21 [1] : vector<8x8xf32> to vector<8xf32>
    %29 = vector.shape_cast %28 : vector<8xf32> to vector<8x1xf32>
    %30 = tpu.reciprocal %29 {approx = true} : vector<8x1xf32> -> vector<8x1xf32>
    %31 = vector.broadcast %30 : vector<8x1xf32> to vector<8x8xf32>
    %32 = arith.mulf %27, %31 : vector<8x8xf32>
    %cst_22 = arith.constant dense<0.000000e+00> : vector<8x8xf32>
    %33 = tpu.matmul %32, %19, %cst_22 {dimension_numbers = #tpu.dot_dimension_numbers<[1], [0], [0], [1], [0, 0, 1, 1], [], []>} : vector<8x8xf32>, vector<8x8xf32>, vector<8x8xf32> -> vector<8x8xf32>
    %34 = vector.extract_strided_slice %16 {offsets = [0, 8], sizes = [8, 8], strides = [1, 1]} : vector<8x96xf32> to vector<8x8xf32>
    %35 = vector.extract_strided_slice %16 {offsets = [0, 40], sizes = [8, 8], strides = [1, 1]} : vector<8x96xf32> to vector<8x8xf32>
    %36 = vector.extract_strided_slice %16 {offsets = [0, 72], sizes = [8, 8], strides = [1, 1]} : vector<8x96xf32> to vector<8x8xf32>
    %cst_23 = arith.constant dense<0.000000e+00> : vector<8x8xf32>
    %37 = tpu.matmul %34, %35, %cst_23 {dimension_numbers = #tpu.dot_dimension_numbers<[1], [1], [0], [0], [0, 0, 1, 0], [], []>} : vector<8x8xf32>, vector<8x8xf32>, vector<8x8xf32> -> vector<8x8xf32>
    %cst_24 = arith.constant 0.353553385 : f32
    %38 = vector.broadcast %cst_24 : f32 to vector<8x8xf32>
    %39 = arith.mulf %37, %38 : vector<8x8xf32>
    %cst_25 = arith.constant dense<0xFF800000> : vector<8xf32>
    %40 = vector.multi_reduction <maximumf>, %39, %cst_25 [1] : vector<8x8xf32> to vector<8xf32>
    %41 = vector.shape_cast %40 : vector<8xf32> to vector<8x1xf32>
    %42 = vector.broadcast %41 : vector<8x1xf32> to vector<8x8xf32>
    %43 = arith.subf %39, %42 : vector<8x8xf32>
    %44 = math.exp %43 : vector<8x8xf32>
    %cst_26 = arith.constant dense<0.000000e+00> : vector<8xf32>
    %45 = vector.multi_reduction <add>, %44, %cst_26 [1] : vector<8x8xf32> to vector<8xf32>
    %46 = vector.shape_cast %45 : vector<8xf32> to vector<8x1xf32>
    %47 = tpu.reciprocal %46 {approx = true} : vector<8x1xf32> -> vector<8x1xf32>
    %48 = vector.broadcast %47 : vector<8x1xf32> to vector<8x8xf32>
    %49 = arith.mulf %44, %48 : vector<8x8xf32>
    %cst_27 = arith.constant dense<0.000000e+00> : vector<8x8xf32>
    %50 = tpu.matmul %49, %36, %cst_27 {dimension_numbers = #tpu.dot_dimension_numbers<[1], [0], [0], [1], [0, 0, 1, 1], [], []>} : vector<8x8xf32>, vector<8x8xf32>, vector<8x8xf32> -> vector<8x8xf32>
    %51 = vector.extract_strided_slice %16 {offsets = [0, 16], sizes = [8, 8], strides = [1, 1]} : vector<8x96xf32> to vector<8x8xf32>
    %52 = vector.extract_strided_slice %16 {offsets = [0, 48], sizes = [8, 8], strides = [1, 1]} : vector<8x96xf32> to vector<8x8xf32>
    %53 = vector.extract_strided_slice %16 {offsets = [0, 80], sizes = [8, 8], strides = [1, 1]} : vector<8x96xf32> to vector<8x8xf32>
    %cst_28 = arith.constant dense<0.000000e+00> : vector<8x8xf32>
    %54 = tpu.matmul %51, %52, %cst_28 {dimension_numbers = #tpu.dot_dimension_numbers<[1], [1], [0], [0], [0, 0, 1, 0], [], []>} : vector<8x8xf32>, vector<8x8xf32>, vector<8x8xf32> -> vector<8x8xf32>
    %cst_29 = arith.constant 0.353553385 : f32
    %55 = vector.broadcast %cst_29 : f32 to vector<8x8xf32>
    %56 = arith.mulf %54, %55 : vector<8x8xf32>
    %cst_30 = arith.constant dense<0xFF800000> : vector<8xf32>
    %57 = vector.multi_reduction <maximumf>, %56, %cst_30 [1] : vector<8x8xf32> to vector<8xf32>
    %58 = vector.shape_cast %57 : vector<8xf32> to vector<8x1xf32>
    %59 = vector.broadcast %58 : vector<8x1xf32> to vector<8x8xf32>
    %60 = arith.subf %56, %59 : vector<8x8xf32>
    %61 = math.exp %60 : vector<8x8xf32>
    %cst_31 = arith.constant dense<0.000000e+00> : vector<8xf32>
    %62 = vector.multi_reduction <add>, %61, %cst_31 [1] : vector<8x8xf32> to vector<8xf32>
    %63 = vector.shape_cast %62 : vector<8xf32> to vector<8x1xf32>
    %64 = tpu.reciprocal %63 {approx = true} : vector<8x1xf32> -> vector<8x1xf32>
    %65 = vector.broadcast %64 : vector<8x1xf32> to vector<8x8xf32>
    %66 = arith.mulf %61, %65 : vector<8x8xf32>
    %cst_32 = arith.constant dense<0.000000e+00> : vector<8x8xf32>
    %67 = tpu.matmul %66, %53, %cst_32 {dimension_numbers = #tpu.dot_dimension_numbers<[1], [0], [0], [1], [0, 0, 1, 1], [], []>} : vector<8x8xf32>, vector<8x8xf32>, vector<8x8xf32> -> vector<8x8xf32>
    %68 = vector.extract_strided_slice %16 {offsets = [0, 24], sizes = [8, 8], strides = [1, 1]} : vector<8x96xf32> to vector<8x8xf32>
    %69 = vector.extract_strided_slice %16 {offsets = [0, 56], sizes = [8, 8], strides = [1, 1]} : vector<8x96xf32> to vector<8x8xf32>
    %70 = vector.extract_strided_slice %16 {offsets = [0, 88], sizes = [8, 8], strides = [1, 1]} : vector<8x96xf32> to vector<8x8xf32>
    %cst_33 = arith.constant dense<0.000000e+00> : vector<8x8xf32>
    %71 = tpu.matmul %68, %69, %cst_33 {dimension_numbers = #tpu.dot_dimension_numbers<[1], [1], [0], [0], [0, 0, 1, 0], [], []>} : vector<8x8xf32>, vector<8x8xf32>, vector<8x8xf32> -> vector<8x8xf32>
    %cst_34 = arith.constant 0.353553385 : f32
    %72 = vector.broadcast %cst_34 : f32 to vector<8x8xf32>
    %73 = arith.mulf %71, %72 : vector<8x8xf32>
    %cst_35 = arith.constant dense<0xFF800000> : vector<8xf32>
    %74 = vector.multi_reduction <maximumf>, %73, %cst_35 [1] : vector<8x8xf32> to vector<8xf32>
    %75 = vector.shape_cast %74 : vector<8xf32> to vector<8x1xf32>
    %76 = vector.broadcast %75 : vector<8x1xf32> to vector<8x8xf32>
    %77 = arith.subf %73, %76 : vector<8x8xf32>
    %78 = math.exp %77 : vector<8x8xf32>
    %cst_36 = arith.constant dense<0.000000e+00> : vector<8xf32>
    %79 = vector.multi_reduction <add>, %78, %cst_36 [1] : vector<8x8xf32> to vector<8xf32>
    %80 = vector.shape_cast %79 : vector<8xf32> to vector<8x1xf32>
    %81 = tpu.reciprocal %80 {approx = true} : vector<8x1xf32> -> vector<8x1xf32>
    %82 = vector.broadcast %81 : vector<8x1xf32> to vector<8x8xf32>
    %83 = arith.mulf %78, %82 : vector<8x8xf32>
    %cst_37 = arith.constant dense<0.000000e+00> : vector<8x8xf32>
    %84 = tpu.matmul %83, %70, %cst_37 {dimension_numbers = #tpu.dot_dimension_numbers<[1], [0], [0], [1], [0, 0, 1, 1], [], []>} : vector<8x8xf32>, vector<8x8xf32>, vector<8x8xf32> -> vector<8x8xf32>
    %85 = tpu.concatenate %33, %50, %67, %84 in 1 : vector<8x8xf32>, vector<8x8xf32>, vector<8x8xf32>, vector<8x8xf32> -> vector<8x32xf32>
    %c0_38 = arith.constant 0 : index
    %c0_39 = arith.constant 0 : index
    %c0_40 = arith.constant 0 : index
    %86 = vector.load %arg8[%c0_38, %c0_39, %c0_40] : memref<2x32x32xf32, #tpu.memory_space<vmem>>, vector<1x32x32xf32>
    %87 = vector.shape_cast %86 : vector<1x32x32xf32> to vector<32x32xf32>
    %cst_41 = arith.constant dense<0.000000e+00> : vector<8x32xf32>
    %88 = tpu.matmul %85, %87, %cst_41 {dimension_numbers = #tpu.dot_dimension_numbers<[1], [1], [0], [0], [0, 0, 1, 0], [], []>} : vector<8x32xf32>, vector<32x32xf32>, vector<8x32xf32> -> vector<8x32xf32>
    %c0_42 = arith.constant 0 : index
    %c0_43 = arith.constant 0 : index
    %c0_44 = arith.constant 0 : index
    %89 = vector.load %arg9[%c0_42, %c0_43, %c0_44] : memref<2x1x32xf32, #tpu.memory_space<vmem>>, vector<1x1x32xf32>
    %90 = vector.shape_cast %89 : vector<1x1x32xf32> to vector<1x32xf32>
    %91 = vector.broadcast %90 : vector<1x32xf32> to vector<8x32xf32>
    %92 = arith.addf %88, %91 : vector<8x32xf32>
    %93 = arith.addf %13, %92 : vector<8x32xf32>
    %cst_45 = arith.constant dense<0.000000e+00> : vector<32xf32>
    %94 = vector.multi_reduction <add>, %93, %cst_45 [0] : vector<8x32xf32> to vector<32xf32>
    %95 = vector.shape_cast %94 : vector<32xf32> to vector<1x32xf32>
    %cst_46 = arith.constant 8.000000e+00 : f32
    %96 = vector.broadcast %cst_46 : f32 to vector<1x32xf32>
    %97 = arith.divf %95, %96 : vector<1x32xf32>
    %98 = vector.broadcast %97 : vector<1x32xf32> to vector<8x32xf32>
    %99 = arith.subf %93, %98 : vector<8x32xf32>
    %100 = arith.mulf %99, %99 : vector<8x32xf32>
    %cst_47 = arith.constant dense<0.000000e+00> : vector<32xf32>
    %101 = vector.multi_reduction <add>, %100, %cst_47 [0] : vector<8x32xf32> to vector<32xf32>
    %102 = vector.shape_cast %101 : vector<32xf32> to vector<1x32xf32>
    %cst_48 = arith.constant 8.000000e+00 : f32
    %103 = vector.broadcast %cst_48 : f32 to vector<1x32xf32>
    %104 = arith.divf %102, %103 : vector<1x32xf32>
    %105 = vector.broadcast %97 : vector<1x32xf32> to vector<8x32xf32>
    %106 = arith.subf %93, %105 : vector<8x32xf32>
    %cst_49 = arith.constant 9.99999974E-6 : f32
    %107 = vector.broadcast %cst_49 : f32 to vector<1x32xf32>
    %108 = arith.addf %104, %107 : vector<1x32xf32>
    %109 = math.rsqrt %108 : vector<1x32xf32>
    %110 = vector.broadcast %109 : vector<1x32xf32> to vector<8x32xf32>
    %111 = arith.mulf %106, %110 : vector<8x32xf32>
    %c0_50 = arith.constant 0 : index
    %c0_51 = arith.constant 0 : index
    %c0_52 = arith.constant 0 : index
    %112 = vector.load %arg10[%c0_50, %c0_51, %c0_52] : memref<2x1x32xf32, #tpu.memory_space<vmem>>, vector<1x1x32xf32>
    %113 = vector.shape_cast %112 : vector<1x1x32xf32> to vector<1x32xf32>
    %114 = vector.broadcast %113 : vector<1x32xf32> to vector<8x32xf32>
    %115 = arith.mulf %111, %114 : vector<8x32xf32>
    %c0_53 = arith.constant 0 : index
    %c0_54 = arith.constant 0 : index
    %c0_55 = arith.constant 0 : index
    %116 = vector.load %arg11[%c0_53, %c0_54, %c0_55] : memref<2x1x32xf32, #tpu.memory_space<vmem>>, vector<1x1x32xf32>
    %117 = vector.shape_cast %116 : vector<1x1x32xf32> to vector<1x32xf32>
    %118 = vector.broadcast %117 : vector<1x32xf32> to vector<8x32xf32>
    %119 = arith.addf %115, %118 : vector<8x32xf32>
    %c0_56 = arith.constant 0 : index
    %c0_57 = arith.constant 0 : index
    %c0_58 = arith.constant 0 : index
    %120 = vector.load %arg12[%c0_56, %c0_57, %c0_58] : memref<2x64x32xf32, #tpu.memory_space<vmem>>, vector<1x64x32xf32>
    %121 = vector.shape_cast %120 : vector<1x64x32xf32> to vector<64x32xf32>
    %cst_59 = arith.constant dense<0.000000e+00> : vector<8x64xf32>
    %122 = tpu.matmul %119, %121, %cst_59 {dimension_numbers = #tpu.dot_dimension_numbers<[1], [1], [0], [0], [0, 0, 1, 0], [], []>} : vector<8x32xf32>, vector<64x32xf32>, vector<8x64xf32> -> vector<8x64xf32>
    %c0_60 = arith.constant 0 : index
    %c0_61 = arith.constant 0 : index
    %c0_62 = arith.constant 0 : index
    %123 = vector.load %arg13[%c0_60, %c0_61, %c0_62] : memref<2x1x64xf32, #tpu.memory_space<vmem>>, vector<1x1x64xf32>
    %124 = vector.shape_cast %123 : vector<1x1x64xf32> to vector<1x64xf32>
    %125 = vector.broadcast %124 : vector<1x64xf32> to vector<8x64xf32>
    %126 = arith.addf %122, %125 : vector<8x64xf32>
    %cst_63 = arith.constant 0.000000e+00 : f32
    %127 = vector.broadcast %cst_63 : f32 to vector<8x64xf32>
    %128 = arith.maximumf %126, %127 : vector<8x64xf32>
    %c0_64 = arith.constant 0 : index
    %c0_65 = arith.constant 0 : index
    %c0_66 = arith.constant 0 : index
    %129 = vector.load %arg14[%c0_64, %c0_65, %c0_66] : memref<2x32x64xf32, #tpu.memory_space<vmem>>, vector<1x32x64xf32>
    %130 = vector.shape_cast %129 : vector<1x32x64xf32> to vector<32x64xf32>
    %cst_67 = arith.constant dense<0.000000e+00> : vector<8x32xf32>
    %131 = tpu.matmul %128, %130, %cst_67 {dimension_numbers = #tpu.dot_dimension_numbers<[1], [1], [0], [0], [0, 0, 1, 0], [], []>} : vector<8x64xf32>, vector<32x64xf32>, vector<8x32xf32> -> vector<8x32xf32>
    %c0_68 = arith.constant 0 : index
    %c0_69 = arith.constant 0 : index
    %c0_70 = arith.constant 0 : index
    %132 = vector.load %arg15[%c0_68, %c0_69, %c0_70] : memref<2x1x32xf32, #tpu.memory_space<vmem>>, vector<1x1x32xf32>
    %133 = vector.shape_cast %132 : vector<1x1x32xf32> to vector<1x32xf32>
    %134 = vector.broadcast %133 : vector<1x32xf32> to vector<8x32xf32>
    %135 = arith.addf %131, %134 : vector<8x32xf32>
    %136 = arith.addf %119, %135 : vector<8x32xf32>
    %cst_71 = arith.constant dense<0.000000e+00> : vector<32xf32>
    %137 = vector.multi_reduction <add>, %136, %cst_71 [0] : vector<8x32xf32> to vector<32xf32>
    %138 = vector.shape_cast %137 : vector<32xf32> to vector<1x32xf32>
    %cst_72 = arith.constant 8.000000e+00 : f32
    %139 = vector.broadcast %cst_72 : f32 to vector<1x32xf32>
    %140 = arith.divf %138, %139 : vector<1x32xf32>
    %141 = vector.broadcast %140 : vector<1x32xf32> to vector<8x32xf32>
    %142 = arith.subf %136, %141 : vector<8x32xf32>
    %143 = arith.mulf %142, %142 : vector<8x32xf32>
    %cst_73 = arith.constant dense<0.000000e+00> : vector<32xf32>
    %144 = vector.multi_reduction <add>, %143, %cst_73 [0] : vector<8x32xf32> to vector<32xf32>
    %145 = vector.shape_cast %144 : vector<32xf32> to vector<1x32xf32>
    %cst_74 = arith.constant 8.000000e+00 : f32
    %146 = vector.broadcast %cst_74 : f32 to vector<1x32xf32>
    %147 = arith.divf %145, %146 : vector<1x32xf32>
    %148 = vector.broadcast %140 : vector<1x32xf32> to vector<8x32xf32>
    %149 = arith.subf %136, %148 : vector<8x32xf32>
    %cst_75 = arith.constant 9.99999974E-6 : f32
    %150 = vector.broadcast %cst_75 : f32 to vector<1x32xf32>
    %151 = arith.addf %147, %150 : vector<1x32xf32>
    %152 = math.rsqrt %151 : vector<1x32xf32>
    %153 = vector.broadcast %152 : vector<1x32xf32> to vector<8x32xf32>
    %154 = arith.mulf %149, %153 : vector<8x32xf32>
    %c0_76 = arith.constant 0 : index
    %c0_77 = arith.constant 0 : index
    %c0_78 = arith.constant 0 : index
    %155 = vector.load %arg16[%c0_76, %c0_77, %c0_78] : memref<2x1x32xf32, #tpu.memory_space<vmem>>, vector<1x1x32xf32>
    %156 = vector.shape_cast %155 : vector<1x1x32xf32> to vector<1x32xf32>
    %157 = vector.broadcast %156 : vector<1x32xf32> to vector<8x32xf32>
    %158 = arith.mulf %154, %157 : vector<8x32xf32>
    %c0_79 = arith.constant 0 : index
    %c0_80 = arith.constant 0 : index
    %c0_81 = arith.constant 0 : index
    %159 = vector.load %arg17[%c0_79, %c0_80, %c0_81] : memref<2x1x32xf32, #tpu.memory_space<vmem>>, vector<1x1x32xf32>
    %160 = vector.shape_cast %159 : vector<1x1x32xf32> to vector<1x32xf32>
    %161 = vector.broadcast %160 : vector<1x32xf32> to vector<8x32xf32>
    %162 = arith.addf %158, %161 : vector<8x32xf32>
    %c1 = arith.constant 1 : index
    %c0_82 = arith.constant 0 : index
    %c0_83 = arith.constant 0 : index
    %163 = vector.load %arg7[%c1, %c0_82, %c0_83] : memref<2x96x32xf32, #tpu.memory_space<vmem>>, vector<1x96x32xf32>
    %164 = vector.shape_cast %163 : vector<1x96x32xf32> to vector<96x32xf32>
    %cst_84 = arith.constant dense<0.000000e+00> : vector<8x96xf32>
    %165 = tpu.matmul %162, %164, %cst_84 {dimension_numbers = #tpu.dot_dimension_numbers<[1], [1], [0], [0], [0, 0, 1, 0], [], []>} : vector<8x32xf32>, vector<96x32xf32>, vector<8x96xf32> -> vector<8x96xf32>
    %166 = vector.extract_strided_slice %165 {offsets = [0, 0], sizes = [8, 8], strides = [1, 1]} : vector<8x96xf32> to vector<8x8xf32>
    %167 = vector.extract_strided_slice %165 {offsets = [0, 32], sizes = [8, 8], strides = [1, 1]} : vector<8x96xf32> to vector<8x8xf32>
    %168 = vector.extract_strided_slice %165 {offsets = [0, 64], sizes = [8, 8], strides = [1, 1]} : vector<8x96xf32> to vector<8x8xf32>
    %cst_85 = arith.constant dense<0.000000e+00> : vector<8x8xf32>
    %169 = tpu.matmul %166, %167, %cst_85 {dimension_numbers = #tpu.dot_dimension_numbers<[1], [1], [0], [0], [0, 0, 1, 0], [], []>} : vector<8x8xf32>, vector<8x8xf32>, vector<8x8xf32> -> vector<8x8xf32>
    %cst_86 = arith.constant 0.353553385 : f32
    %170 = vector.broadcast %cst_86 : f32 to vector<8x8xf32>
    %171 = arith.mulf %169, %170 : vector<8x8xf32>
    %cst_87 = arith.constant dense<0xFF800000> : vector<8xf32>
    %172 = vector.multi_reduction <maximumf>, %171, %cst_87 [1] : vector<8x8xf32> to vector<8xf32>
    %173 = vector.shape_cast %172 : vector<8xf32> to vector<8x1xf32>
    %174 = vector.broadcast %173 : vector<8x1xf32> to vector<8x8xf32>
    %175 = arith.subf %171, %174 : vector<8x8xf32>
    %176 = math.exp %175 : vector<8x8xf32>
    %cst_88 = arith.constant dense<0.000000e+00> : vector<8xf32>
    %177 = vector.multi_reduction <add>, %176, %cst_88 [1] : vector<8x8xf32> to vector<8xf32>
    %178 = vector.shape_cast %177 : vector<8xf32> to vector<8x1xf32>
    %179 = tpu.reciprocal %178 {approx = true} : vector<8x1xf32> -> vector<8x1xf32>
    %180 = vector.broadcast %179 : vector<8x1xf32> to vector<8x8xf32>
    %181 = arith.mulf %176, %180 : vector<8x8xf32>
    %cst_89 = arith.constant dense<0.000000e+00> : vector<8x8xf32>
    %182 = tpu.matmul %181, %168, %cst_89 {dimension_numbers = #tpu.dot_dimension_numbers<[1], [0], [0], [1], [0, 0, 1, 1], [], []>} : vector<8x8xf32>, vector<8x8xf32>, vector<8x8xf32> -> vector<8x8xf32>
    %183 = vector.extract_strided_slice %165 {offsets = [0, 8], sizes = [8, 8], strides = [1, 1]} : vector<8x96xf32> to vector<8x8xf32>
    %184 = vector.extract_strided_slice %165 {offsets = [0, 40], sizes = [8, 8], strides = [1, 1]} : vector<8x96xf32> to vector<8x8xf32>
    %185 = vector.extract_strided_slice %165 {offsets = [0, 72], sizes = [8, 8], strides = [1, 1]} : vector<8x96xf32> to vector<8x8xf32>
    %cst_90 = arith.constant dense<0.000000e+00> : vector<8x8xf32>
    %186 = tpu.matmul %183, %184, %cst_90 {dimension_numbers = #tpu.dot_dimension_numbers<[1], [1], [0], [0], [0, 0, 1, 0], [], []>} : vector<8x8xf32>, vector<8x8xf32>, vector<8x8xf32> -> vector<8x8xf32>
    %cst_91 = arith.constant 0.353553385 : f32
    %187 = vector.broadcast %cst_91 : f32 to vector<8x8xf32>
    %188 = arith.mulf %186, %187 : vector<8x8xf32>
    %cst_92 = arith.constant dense<0xFF800000> : vector<8xf32>
    %189 = vector.multi_reduction <maximumf>, %188, %cst_92 [1] : vector<8x8xf32> to vector<8xf32>
    %190 = vector.shape_cast %189 : vector<8xf32> to vector<8x1xf32>
    %191 = vector.broadcast %190 : vector<8x1xf32> to vector<8x8xf32>
    %192 = arith.subf %188, %191 : vector<8x8xf32>
    %193 = math.exp %192 : vector<8x8xf32>
    %cst_93 = arith.constant dense<0.000000e+00> : vector<8xf32>
    %194 = vector.multi_reduction <add>, %193, %cst_93 [1] : vector<8x8xf32> to vector<8xf32>
    %195 = vector.shape_cast %194 : vector<8xf32> to vector<8x1xf32>
    %196 = tpu.reciprocal %195 {approx = true} : vector<8x1xf32> -> vector<8x1xf32>
    %197 = vector.broadcast %196 : vector<8x1xf32> to vector<8x8xf32>
    %198 = arith.mulf %193, %197 : vector<8x8xf32>
    %cst_94 = arith.constant dense<0.000000e+00> : vector<8x8xf32>
    %199 = tpu.matmul %198, %185, %cst_94 {dimension_numbers = #tpu.dot_dimension_numbers<[1], [0], [0], [1], [0, 0, 1, 1], [], []>} : vector<8x8xf32>, vector<8x8xf32>, vector<8x8xf32> -> vector<8x8xf32>
    %200 = vector.extract_strided_slice %165 {offsets = [0, 16], sizes = [8, 8], strides = [1, 1]} : vector<8x96xf32> to vector<8x8xf32>
    %201 = vector.extract_strided_slice %165 {offsets = [0, 48], sizes = [8, 8], strides = [1, 1]} : vector<8x96xf32> to vector<8x8xf32>
    %202 = vector.extract_strided_slice %165 {offsets = [0, 80], sizes = [8, 8], strides = [1, 1]} : vector<8x96xf32> to vector<8x8xf32>
    %cst_95 = arith.constant dense<0.000000e+00> : vector<8x8xf32>
    %203 = tpu.matmul %200, %201, %cst_95 {dimension_numbers = #tpu.dot_dimension_numbers<[1], [1], [0], [0], [0, 0, 1, 0], [], []>} : vector<8x8xf32>, vector<8x8xf32>, vector<8x8xf32> -> vector<8x8xf32>
    %cst_96 = arith.constant 0.353553385 : f32
    %204 = vector.broadcast %cst_96 : f32 to vector<8x8xf32>
    %205 = arith.mulf %203, %204 : vector<8x8xf32>
    %cst_97 = arith.constant dense<0xFF800000> : vector<8xf32>
    %206 = vector.multi_reduction <maximumf>, %205, %cst_97 [1] : vector<8x8xf32> to vector<8xf32>
    %207 = vector.shape_cast %206 : vector<8xf32> to vector<8x1xf32>
    %208 = vector.broadcast %207 : vector<8x1xf32> to vector<8x8xf32>
    %209 = arith.subf %205, %208 : vector<8x8xf32>
    %210 = math.exp %209 : vector<8x8xf32>
    %cst_98 = arith.constant dense<0.000000e+00> : vector<8xf32>
    %211 = vector.multi_reduction <add>, %210, %cst_98 [1] : vector<8x8xf32> to vector<8xf32>
    %212 = vector.shape_cast %211 : vector<8xf32> to vector<8x1xf32>
    %213 = tpu.reciprocal %212 {approx = true} : vector<8x1xf32> -> vector<8x1xf32>
    %214 = vector.broadcast %213 : vector<8x1xf32> to vector<8x8xf32>
    %215 = arith.mulf %210, %214 : vector<8x8xf32>
    %cst_99 = arith.constant dense<0.000000e+00> : vector<8x8xf32>
    %216 = tpu.matmul %215, %202, %cst_99 {dimension_numbers = #tpu.dot_dimension_numbers<[1], [0], [0], [1], [0, 0, 1, 1], [], []>} : vector<8x8xf32>, vector<8x8xf32>, vector<8x8xf32> -> vector<8x8xf32>
    %217 = vector.extract_strided_slice %165 {offsets = [0, 24], sizes = [8, 8], strides = [1, 1]} : vector<8x96xf32> to vector<8x8xf32>
    %218 = vector.extract_strided_slice %165 {offsets = [0, 56], sizes = [8, 8], strides = [1, 1]} : vector<8x96xf32> to vector<8x8xf32>
    %219 = vector.extract_strided_slice %165 {offsets = [0, 88], sizes = [8, 8], strides = [1, 1]} : vector<8x96xf32> to vector<8x8xf32>
    %cst_100 = arith.constant dense<0.000000e+00> : vector<8x8xf32>
    %220 = tpu.matmul %217, %218, %cst_100 {dimension_numbers = #tpu.dot_dimension_numbers<[1], [1], [0], [0], [0, 0, 1, 0], [], []>} : vector<8x8xf32>, vector<8x8xf32>, vector<8x8xf32> -> vector<8x8xf32>
    %cst_101 = arith.constant 0.353553385 : f32
    %221 = vector.broadcast %cst_101 : f32 to vector<8x8xf32>
    %222 = arith.mulf %220, %221 : vector<8x8xf32>
    %cst_102 = arith.constant dense<0xFF800000> : vector<8xf32>
    %223 = vector.multi_reduction <maximumf>, %222, %cst_102 [1] : vector<8x8xf32> to vector<8xf32>
    %224 = vector.shape_cast %223 : vector<8xf32> to vector<8x1xf32>
    %225 = vector.broadcast %224 : vector<8x1xf32> to vector<8x8xf32>
    %226 = arith.subf %222, %225 : vector<8x8xf32>
    %227 = math.exp %226 : vector<8x8xf32>
    %cst_103 = arith.constant dense<0.000000e+00> : vector<8xf32>
    %228 = vector.multi_reduction <add>, %227, %cst_103 [1] : vector<8x8xf32> to vector<8xf32>
    %229 = vector.shape_cast %228 : vector<8xf32> to vector<8x1xf32>
    %230 = tpu.reciprocal %229 {approx = true} : vector<8x1xf32> -> vector<8x1xf32>
    %231 = vector.broadcast %230 : vector<8x1xf32> to vector<8x8xf32>
    %232 = arith.mulf %227, %231 : vector<8x8xf32>
    %cst_104 = arith.constant dense<0.000000e+00> : vector<8x8xf32>
    %233 = tpu.matmul %232, %219, %cst_104 {dimension_numbers = #tpu.dot_dimension_numbers<[1], [0], [0], [1], [0, 0, 1, 1], [], []>} : vector<8x8xf32>, vector<8x8xf32>, vector<8x8xf32> -> vector<8x8xf32>
    %234 = tpu.concatenate %182, %199, %216, %233 in 1 : vector<8x8xf32>, vector<8x8xf32>, vector<8x8xf32>, vector<8x8xf32> -> vector<8x32xf32>
    %c1_105 = arith.constant 1 : index
    %c0_106 = arith.constant 0 : index
    %c0_107 = arith.constant 0 : index
    %235 = vector.load %arg8[%c1_105, %c0_106, %c0_107] : memref<2x32x32xf32, #tpu.memory_space<vmem>>, vector<1x32x32xf32>
    %236 = vector.shape_cast %235 : vector<1x32x32xf32> to vector<32x32xf32>
    %cst_108 = arith.constant dense<0.000000e+00> : vector<8x32xf32>
    %237 = tpu.matmul %234, %236, %cst_108 {dimension_numbers = #tpu.dot_dimension_numbers<[1], [1], [0], [0], [0, 0, 1, 0], [], []>} : vector<8x32xf32>, vector<32x32xf32>, vector<8x32xf32> -> vector<8x32xf32>
    %c1_109 = arith.constant 1 : index
    %c0_110 = arith.constant 0 : index
    %c0_111 = arith.constant 0 : index
    %238 = vector.load %arg9[%c1_109, %c0_110, %c0_111] : memref<2x1x32xf32, #tpu.memory_space<vmem>>, vector<1x1x32xf32>
    %239 = vector.shape_cast %238 : vector<1x1x32xf32> to vector<1x32xf32>
    %240 = vector.broadcast %239 : vector<1x32xf32> to vector<8x32xf32>
    %241 = arith.addf %237, %240 : vector<8x32xf32>
    %242 = arith.addf %162, %241 : vector<8x32xf32>
    %cst_112 = arith.constant dense<0.000000e+00> : vector<32xf32>
    %243 = vector.multi_reduction <add>, %242, %cst_112 [0] : vector<8x32xf32> to vector<32xf32>
    %244 = vector.shape_cast %243 : vector<32xf32> to vector<1x32xf32>
    %cst_113 = arith.constant 8.000000e+00 : f32
    %245 = vector.broadcast %cst_113 : f32 to vector<1x32xf32>
    %246 = arith.divf %244, %245 : vector<1x32xf32>
    %247 = vector.broadcast %246 : vector<1x32xf32> to vector<8x32xf32>
    %248 = arith.subf %242, %247 : vector<8x32xf32>
    %249 = arith.mulf %248, %248 : vector<8x32xf32>
    %cst_114 = arith.constant dense<0.000000e+00> : vector<32xf32>
    %250 = vector.multi_reduction <add>, %249, %cst_114 [0] : vector<8x32xf32> to vector<32xf32>
    %251 = vector.shape_cast %250 : vector<32xf32> to vector<1x32xf32>
    %cst_115 = arith.constant 8.000000e+00 : f32
    %252 = vector.broadcast %cst_115 : f32 to vector<1x32xf32>
    %253 = arith.divf %251, %252 : vector<1x32xf32>
    %254 = vector.broadcast %246 : vector<1x32xf32> to vector<8x32xf32>
    %255 = arith.subf %242, %254 : vector<8x32xf32>
    %cst_116 = arith.constant 9.99999974E-6 : f32
    %256 = vector.broadcast %cst_116 : f32 to vector<1x32xf32>
    %257 = arith.addf %253, %256 : vector<1x32xf32>
    %258 = math.rsqrt %257 : vector<1x32xf32>
    %259 = vector.broadcast %258 : vector<1x32xf32> to vector<8x32xf32>
    %260 = arith.mulf %255, %259 : vector<8x32xf32>
    %c1_117 = arith.constant 1 : index
    %c0_118 = arith.constant 0 : index
    %c0_119 = arith.constant 0 : index
    %261 = vector.load %arg10[%c1_117, %c0_118, %c0_119] : memref<2x1x32xf32, #tpu.memory_space<vmem>>, vector<1x1x32xf32>
    %262 = vector.shape_cast %261 : vector<1x1x32xf32> to vector<1x32xf32>
    %263 = vector.broadcast %262 : vector<1x32xf32> to vector<8x32xf32>
    %264 = arith.mulf %260, %263 : vector<8x32xf32>
    %c1_120 = arith.constant 1 : index
    %c0_121 = arith.constant 0 : index
    %c0_122 = arith.constant 0 : index
    %265 = vector.load %arg11[%c1_120, %c0_121, %c0_122] : memref<2x1x32xf32, #tpu.memory_space<vmem>>, vector<1x1x32xf32>
    %266 = vector.shape_cast %265 : vector<1x1x32xf32> to vector<1x32xf32>
    %267 = vector.broadcast %266 : vector<1x32xf32> to vector<8x32xf32>
    %268 = arith.addf %264, %267 : vector<8x32xf32>
    %c1_123 = arith.constant 1 : index
    %c0_124 = arith.constant 0 : index
    %c0_125 = arith.constant 0 : index
    %269 = vector.load %arg12[%c1_123, %c0_124, %c0_125] : memref<2x64x32xf32, #tpu.memory_space<vmem>>, vector<1x64x32xf32>
    %270 = vector.shape_cast %269 : vector<1x64x32xf32> to vector<64x32xf32>
    %cst_126 = arith.constant dense<0.000000e+00> : vector<8x64xf32>
    %271 = tpu.matmul %268, %270, %cst_126 {dimension_numbers = #tpu.dot_dimension_numbers<[1], [1], [0], [0], [0, 0, 1, 0], [], []>} : vector<8x32xf32>, vector<64x32xf32>, vector<8x64xf32> -> vector<8x64xf32>
    %c1_127 = arith.constant 1 : index
    %c0_128 = arith.constant 0 : index
    %c0_129 = arith.constant 0 : index
    %272 = vector.load %arg13[%c1_127, %c0_128, %c0_129] : memref<2x1x64xf32, #tpu.memory_space<vmem>>, vector<1x1x64xf32>
    %273 = vector.shape_cast %272 : vector<1x1x64xf32> to vector<1x64xf32>
    %274 = vector.broadcast %273 : vector<1x64xf32> to vector<8x64xf32>
    %275 = arith.addf %271, %274 : vector<8x64xf32>
    %cst_130 = arith.constant 0.000000e+00 : f32
    %276 = vector.broadcast %cst_130 : f32 to vector<8x64xf32>
    %277 = arith.maximumf %275, %276 : vector<8x64xf32>
    %c1_131 = arith.constant 1 : index
    %c0_132 = arith.constant 0 : index
    %c0_133 = arith.constant 0 : index
    %278 = vector.load %arg14[%c1_131, %c0_132, %c0_133] : memref<2x32x64xf32, #tpu.memory_space<vmem>>, vector<1x32x64xf32>
    %279 = vector.shape_cast %278 : vector<1x32x64xf32> to vector<32x64xf32>
    %cst_134 = arith.constant dense<0.000000e+00> : vector<8x32xf32>
    %280 = tpu.matmul %277, %279, %cst_134 {dimension_numbers = #tpu.dot_dimension_numbers<[1], [1], [0], [0], [0, 0, 1, 0], [], []>} : vector<8x64xf32>, vector<32x64xf32>, vector<8x32xf32> -> vector<8x32xf32>
    %c1_135 = arith.constant 1 : index
    %c0_136 = arith.constant 0 : index
    %c0_137 = arith.constant 0 : index
    %281 = vector.load %arg15[%c1_135, %c0_136, %c0_137] : memref<2x1x32xf32, #tpu.memory_space<vmem>>, vector<1x1x32xf32>
    %282 = vector.shape_cast %281 : vector<1x1x32xf32> to vector<1x32xf32>
    %283 = vector.broadcast %282 : vector<1x32xf32> to vector<8x32xf32>
    %284 = arith.addf %280, %283 : vector<8x32xf32>
    %285 = arith.addf %268, %284 : vector<8x32xf32>
    %cst_138 = arith.constant dense<0.000000e+00> : vector<32xf32>
    %286 = vector.multi_reduction <add>, %285, %cst_138 [0] : vector<8x32xf32> to vector<32xf32>
    %287 = vector.shape_cast %286 : vector<32xf32> to vector<1x32xf32>
    %cst_139 = arith.constant 8.000000e+00 : f32
    %288 = vector.broadcast %cst_139 : f32 to vector<1x32xf32>
    %289 = arith.divf %287, %288 : vector<1x32xf32>
    %290 = vector.broadcast %289 : vector<1x32xf32> to vector<8x32xf32>
    %291 = arith.subf %285, %290 : vector<8x32xf32>
    %292 = arith.mulf %291, %291 : vector<8x32xf32>
    %cst_140 = arith.constant dense<0.000000e+00> : vector<32xf32>
    %293 = vector.multi_reduction <add>, %292, %cst_140 [0] : vector<8x32xf32> to vector<32xf32>
    %294 = vector.shape_cast %293 : vector<32xf32> to vector<1x32xf32>
    %cst_141 = arith.constant 8.000000e+00 : f32
    %295 = vector.broadcast %cst_141 : f32 to vector<1x32xf32>
    %296 = arith.divf %294, %295 : vector<1x32xf32>
    %297 = vector.broadcast %289 : vector<1x32xf32> to vector<8x32xf32>
    %298 = arith.subf %285, %297 : vector<8x32xf32>
    %cst_142 = arith.constant 9.99999974E-6 : f32
    %299 = vector.broadcast %cst_142 : f32 to vector<1x32xf32>
    %300 = arith.addf %296, %299 : vector<1x32xf32>
    %301 = math.rsqrt %300 : vector<1x32xf32>
    %302 = vector.broadcast %301 : vector<1x32xf32> to vector<8x32xf32>
    %303 = arith.mulf %298, %302 : vector<8x32xf32>
    %c1_143 = arith.constant 1 : index
    %c0_144 = arith.constant 0 : index
    %c0_145 = arith.constant 0 : index
    %304 = vector.load %arg16[%c1_143, %c0_144, %c0_145] : memref<2x1x32xf32, #tpu.memory_space<vmem>>, vector<1x1x32xf32>
    %305 = vector.shape_cast %304 : vector<1x1x32xf32> to vector<1x32xf32>
    %306 = vector.broadcast %305 : vector<1x32xf32> to vector<8x32xf32>
    %307 = arith.mulf %303, %306 : vector<8x32xf32>
    %c1_146 = arith.constant 1 : index
    %c0_147 = arith.constant 0 : index
    %c0_148 = arith.constant 0 : index
    %308 = vector.load %arg17[%c1_146, %c0_147, %c0_148] : memref<2x1x32xf32, #tpu.memory_space<vmem>>, vector<1x1x32xf32>
    %309 = vector.shape_cast %308 : vector<1x1x32xf32> to vector<1x32xf32>
    %310 = vector.broadcast %309 : vector<1x32xf32> to vector<8x32xf32>
    %311 = arith.addf %307, %310 : vector<8x32xf32>
    %c0_149 = arith.constant 0 : index
    %c0_150 = arith.constant 0 : index
    %c0_151 = arith.constant 0 : index
    %312 = vector.load %arg19[%c0_149, %c0_150, %c0_151] : memref<1x8x32xf32, #tpu.memory_space<vmem>>, vector<1x8x32xf32>
    %313 = vector.shape_cast %312 : vector<1x8x32xf32> to vector<8x32xf32>
    %314 = vector.shape_cast %311 : vector<8x32xf32> to vector<1x8x32xf32>
    tpu.vector_store %arg19[%c0_149, %c0_150, %c0_151], %314 {strides = array<i32>} : memref<1x8x32xf32, #tpu.memory_space<vmem>>, vector<1x8x32xf32>,
    %c0_152 = arith.constant 0 : index
    %c0_153 = arith.constant 0 : index
    %315 = vector.load %arg18[%c0_152, %c0_153] : memref<64x32xf32, #tpu.memory_space<vmem>>, vector<64x32xf32>
    %cst_154 = arith.constant dense<0.000000e+00> : vector<8x64xf32>
    %316 = tpu.matmul %311, %315, %cst_154 {dimension_numbers = #tpu.dot_dimension_numbers<[1], [1], [0], [0], [0, 0, 1, 0], [], []>} : vector<8x32xf32>, vector<64x32xf32>, vector<8x64xf32> -> vector<8x64xf32>
    %c0_155 = arith.constant 0 : index
    %c0_156 = arith.constant 0 : index
    %c0_157 = arith.constant 0 : index
    %317 = vector.load %arg20[%c0_155, %c0_156, %c0_157] : memref<1x8x64xf32, #tpu.memory_space<vmem>>, vector<1x8x64xf32>
    %318 = vector.shape_cast %317 : vector<1x8x64xf32> to vector<8x64xf32>
    %319 = vector.shape_cast %316 : vector<8x64xf32> to vector<1x8x64xf32>
    tpu.vector_store %arg20[%c0_155, %c0_156, %c0_157], %319 {strides = array<i32>} : memref<1x8x64xf32, #tpu.memory_space<vmem>>, vector<1x8x64xf32>,
    return
  }
  func.func @transform_0(%arg0: i32) -> (i32, i32, i32) {
    %c0_i32 = arith.constant 0 : i32
    %c0_i32_0 = arith.constant 0 : i32
    %c0_i32_1 = arith.constant 0 : i32
    return %arg0, %c0_i32, %c0_i32_0 : i32, i32, i32
  }
  func.func @transform_1(%arg0: i32) -> (i32, i32, i32) {
    %c0_i32 = arith.constant 0 : i32
    %c0_i32_0 = arith.constant 0 : i32
    %c0_i32_1 = arith.constant 0 : i32
    return %arg0, %c0_i32, %c0_i32_0 : i32, i32, i32
  }
  func.func @transform_2(%arg0: i32) -> (i32, i32) {
    %c0_i32 = arith.constant 0 : i32
    %c0_i32_0 = arith.constant 0 : i32
    %c0_i32_1 = arith.constant 0 : i32
    return %c0_i32, %c0_i32_0 : i32, i32
  }
  func.func @transform_3(%arg0: i32) -> (i32, i32) {
    %c0_i32 = arith.constant 0 : i32
    %c0_i32_0 = arith.constant 0 : i32
    %c0_i32_1 = arith.constant 0 : i32
    return %c0_i32, %c0_i32_0 : i32, i32
  }
  func.func @transform_4(%arg0: i32) -> (i32, i32) {
    %c0_i32 = arith.constant 0 : i32
    %c0_i32_0 = arith.constant 0 : i32
    %c0_i32_1 = arith.constant 0 : i32
    return %c0_i32, %c0_i32_0 : i32, i32
  }
  func.func @transform_5(%arg0: i32) -> (i32, i32) {
    %c0_i32 = arith.constant 0 : i32
    %c0_i32_0 = arith.constant 0 : i32
    %c0_i32_1 = arith.constant 0 : i32
    return %c0_i32, %c0_i32_0 : i32, i32
  }
  func.func @transform_6(%arg0: i32) -> (i32, i32, i32) {
    %c0_i32 = arith.constant 0 : i32
    %c0_i32_0 = arith.constant 0 : i32
    %c0_i32_1 = arith.constant 0 : i32
    %c0_i32_2 = arith.constant 0 : i32
    return %c0_i32, %c0_i32_0, %c0_i32_1 : i32, i32, i32
  }
  func.func @transform_7(%arg0: i32) -> (i32, i32, i32) {
    %c0_i32 = arith.constant 0 : i32
    %c0_i32_0 = arith.constant 0 : i32
    %c0_i32_1 = arith.constant 0 : i32
    %c0_i32_2 = arith.constant 0 : i32
    return %c0_i32, %c0_i32_0, %c0_i32_1 : i32, i32, i32
  }
  func.func @transform_8(%arg0: i32) -> (i32, i32, i32) {
    %c0_i32 = arith.constant 0 : i32
    %c0_i32_0 = arith.constant 0 : i32
    %c0_i32_1 = arith.constant 0 : i32
    %c0_i32_2 = arith.constant 0 : i32
    return %c0_i32, %c0_i32_0, %c0_i32_1 : i32, i32, i32
  }
  func.func @transform_9(%arg0: i32) -> (i32, i32, i32) {
    %c0_i32 = arith.constant 0 : i32
    %c0_i32_0 = arith.constant 0 : i32
    %c0_i32_1 = arith.constant 0 : i32
    %c0_i32_2 = arith.constant 0 : i32
    return %c0_i32, %c0_i32_0, %c0_i32_1 : i32, i32, i32
  }
  func.func @transform_10(%arg0: i32) -> (i32, i32, i32) {
    %c0_i32 = arith.constant 0 : i32
    %c0_i32_0 = arith.constant 0 : i32
    %c0_i32_1 = arith.constant 0 : i32
    %c0_i32_2 = arith.constant 0 : i32
    return %c0_i32, %c0_i32_0, %c0_i32_1 : i32, i32, i32
  }
  func.func @transform_11(%arg0: i32) -> (i32, i32, i32) {
    %c0_i32 = arith.constant 0 : i32
    %c0_i32_0 = arith.constant 0 : i32
    %c0_i32_1 = arith.constant 0 : i32
    %c0_i32_2 = arith.constant 0 : i32
    return %c0_i32, %c0_i32_0, %c0_i32_1 : i32, i32, i32
  }
  func.func @transform_12(%arg0: i32) -> (i32, i32, i32) {
    %c0_i32 = arith.constant 0 : i32
    %c0_i32_0 = arith.constant 0 : i32
    %c0_i32_1 = arith.constant 0 : i32
    %c0_i32_2 = arith.constant 0 : i32
    return %c0_i32, %c0_i32_0, %c0_i32_1 : i32, i32, i32
  }
  func.func @transform_13(%arg0: i32) -> (i32, i32, i32) {
    %c0_i32 = arith.constant 0 : i32
    %c0_i32_0 = arith.constant 0 : i32
    %c0_i32_1 = arith.constant 0 : i32
    %c0_i32_2 = arith.constant 0 : i32
    return %c0_i32, %c0_i32_0, %c0_i32_1 : i32, i32, i32
  }
  func.func @transform_14(%arg0: i32) -> (i32, i32, i32) {
    %c0_i32 = arith.constant 0 : i32
    %c0_i32_0 = arith.constant 0 : i32
    %c0_i32_1 = arith.constant 0 : i32
    %c0_i32_2 = arith.constant 0 : i32
    return %c0_i32, %c0_i32_0, %c0_i32_1 : i32, i32, i32
  }
  func.func @transform_15(%arg0: i32) -> (i32, i32, i32) {
    %c0_i32 = arith.constant 0 : i32
    %c0_i32_0 = arith.constant 0 : i32
    %c0_i32_1 = arith.constant 0 : i32
    %c0_i32_2 = arith.constant 0 : i32
    return %c0_i32, %c0_i32_0, %c0_i32_1 : i32, i32, i32
  }
  func.func @transform_16(%arg0: i32) -> (i32, i32, i32) {
    %c0_i32 = arith.constant 0 : i32
    %c0_i32_0 = arith.constant 0 : i32
    %c0_i32_1 = arith.constant 0 : i32
    %c0_i32_2 = arith.constant 0 : i32
    return %c0_i32, %c0_i32_0, %c0_i32_1 : i32, i32, i32
  }
  func.func @transform_17(%arg0: i32) -> (i32, i32) {
    %c0_i32 = arith.constant 0 : i32
    %c0_i32_0 = arith.constant 0 : i32
    %c0_i32_1 = arith.constant 0 : i32
    return %c0_i32, %c0_i32_0 : i32, i32
  }
  func.func @transform_18(%arg0: i32) -> (i32, i32, i32) {
    %c0_i32 = arith.constant 0 : i32
    %c0_i32_0 = arith.constant 0 : i32
    %c0_i32_1 = arith.constant 0 : i32
    return %arg0, %c0_i32, %c0_i32_0 : i32, i32, i32
  }
  func.func @transform_19(%arg0: i32) -> (i32, i32, i32) {
    %c0_i32 = arith.constant 0 : i32
    %c0_i32_0 = arith.constant 0 : i32
    %c0_i32_1 = arith.constant 0 : i32
    return %arg0, %c0_i32, %c0_i32_0 : i32, i32, i32
  }
}

</mosaic_0001>

<llo_original>
// kernel: tpu_custom_call.1
$region0: #{tpu_custom_call.1}
  #allocation0 [shape = 'u32[]', space=smem, size = 0x4, offset = 0x4, fixed_abs, tag = 'smem constant byte address 0x4 - core index']
  #allocation1 [shape = 'u32[72,128]{1,0:T(1,128)}', space=vmem, size = 0x9000, scoped, tag = 'internal scratch']
  %s0 = inlined_call_operand.vmem [shape: f32[2,1,2], index: 0, kind: input, shape index: {}]
  %s1 = inlined_call_operand.vmem [shape: f32[2,7,3], index: 1, kind: input, shape index: {}]
  %s2 = inlined_call_operand.vmem [shape: f32[32,2], index: 2, kind: input, shape index: {}]
  %s3 = inlined_call_operand.vmem [shape: f32[1,32], index: 3, kind: input, shape index: {}]
  %s4 = inlined_call_operand.vmem [shape: f32[32,3], index: 4, kind: input, shape index: {}]
  %s5 = inlined_call_operand.vmem [shape: f32[1,32], index: 5, kind: input, shape index: {}]
  %s6 = inlined_call_operand.vmem [shape: f32[2,96,32], index: 6, kind: input, shape index: {}]
  %s7 = inlined_call_operand.vmem [shape: f32[2,32,32], index: 7, kind: input, shape index: {}]
  %s8 = inlined_call_operand.vmem [shape: f32[2,1,32], index: 8, kind: input, shape index: {}]
  %s9 = inlined_call_operand.vmem [shape: f32[2,1,32], index: 9, kind: input, shape index: {}]
  %s10 = inlined_call_operand.vmem [shape: f32[2,1,32], index: 10, kind: input, shape index: {}]
  %s11 = inlined_call_operand.vmem [shape: f32[2,64,32], index: 11, kind: input, shape index: {}]
  %s12 = inlined_call_operand.vmem [shape: f32[2,1,64], index: 12, kind: input, shape index: {}]
  %s13 = inlined_call_operand.vmem [shape: f32[2,32,64], index: 13, kind: input, shape index: {}]
  %s14 = inlined_call_operand.vmem [shape: f32[2,1,32], index: 14, kind: input, shape index: {}]
  %s15 = inlined_call_operand.vmem [shape: f32[2,1,32], index: 15, kind: input, shape index: {}]
  %s16 = inlined_call_operand.vmem [shape: f32[2,1,32], index: 16, kind: input, shape index: {}]
  %s17 = inlined_call_operand.vmem [shape: f32[64,32], index: 17, kind: input, shape index: {}]
  %s18 = inlined_call_operand.hbm [shape: f32[2,8,32], index: 18, kind: output, shape index: {0}]
  %s19 = inlined_call_operand.hbm [shape: f32[2,8,64], index: 19, kind: output, shape index: {1}]
  %20 = xla_tuple %s18, %s19
  %s21 = sld [smem:[#allocation0]]
  $region113: #{tpu_custom_call.1} parent=0
    _
  %s23 = ssub.s32 1, %s21
  %s24 = scalar_select 0, %s23, %s21
  $region1: #{tpu_custom_call.1} parent=0
    #allocation2 [shape = 'u8[8192]{0}', space=vmem, size = 0x2000, scoped, tag = 'output window, operand 0']
    #allocation3 [shape = 's32[2]{0}', space=sflag, size = 0x8, scoped, tag = 'scoped memory for tpu_custom_call.1']
    #allocation4 [shape = 'u8[8192]{0}', space=vmem, size = 0x2000, scoped, tag = 'output window, operand 1']
    #allocation5 [shape = 's32[2]{0}', space=sflag, size = 0x8, scoped, tag = 'scoped memory for tpu_custom_call.1']
    %25 = vsyncpa [#allocation3], 0
    %s26 = scalar_lea.sflag [#allocation3], 1
    %27 = vsyncpa %s26, 0
    %28 = vsyncpa [#allocation5], 0
    %s29 = scalar_lea.sflag [#allocation5], 1
    %30 = vsyncpa %s29, 0
    loop: start=0, step=1, limit=4
    $region2: #{tpu_custom_call.1} parent=1 // loop_pre_header
      _
    $region3: #{tpu_custom_call.1} parent=1 // loop_header
      %s32 = sphi 0, %s36
      %p33 = scmp.ge.s32.totalorder %s32, 4
      %s42 = sphi 0, %s44
      %s45 = sphi 0, %s42
      %s46 = sphi 0, %s45
      %s62 = sphi 0, %s46
      %s68 = sphi 0, %s70
      %s71 = sphi 0, %s68
      %s72 = sphi 0, %s71
      %s88 = sphi 0, %s72
      %s92 = sphi 0, %s92
      %s94 = sphi 0, %s92
      %s95 = sphi 0, %s94
      %s109 = sphi 0, %s95
      %s113 = sphi 0, %s113
      %s115 = sphi 0, %s113
      %s116 = sphi 0, %s115
      %s130 = sphi 0, %s116
      %s134 = sphi 0, %s134
      %s136 = sphi 0, %s134
      %s137 = sphi 0, %s136
      %s151 = sphi 0, %s137
      %s155 = sphi 0, %s155
      %s157 = sphi 0, %s155
      %s158 = sphi 0, %s157
      %s172 = sphi 0, %s158
      %s176 = sphi 0, %s176
      %s178 = sphi 0, %s176
      %s179 = sphi 0, %s178
      %s193 = sphi 0, %s179
      %s197 = sphi 0, %s197
      %s199 = sphi 0, %s197
      %s200 = sphi 0, %s199
      %s214 = sphi 0, %s200
      %s218 = sphi 0, %s218
      %s220 = sphi 0, %s218
      %s221 = sphi 0, %s220
      %s235 = sphi 0, %s221
      %s239 = sphi 0, %s239
      %s241 = sphi 0, %s239
      %s242 = sphi 0, %s241
      %s256 = sphi 0, %s242
      %s260 = sphi 0, %s260
      %s262 = sphi 0, %s260
      %s263 = sphi 0, %s262
      %s277 = sphi 0, %s263
      %s281 = sphi 0, %s281
      %s283 = sphi 0, %s281
      %s284 = sphi 0, %s283
      %s298 = sphi 0, %s284
      %s302 = sphi 0, %s302
      %s304 = sphi 0, %s302
      %s305 = sphi 0, %s304
      %s319 = sphi 0, %s305
      %s323 = sphi 0, %s323
      %s325 = sphi 0, %s323
      %s326 = sphi 0, %s325
      %s340 = sphi 0, %s326
      %s344 = sphi 0, %s344
      %s346 = sphi 0, %s344
      %s347 = sphi 0, %s346
      %s361 = sphi 0, %s347
      %s365 = sphi 0, %s365
      %s367 = sphi 0, %s365
      %s368 = sphi 0, %s367
      %s382 = sphi 0, %s368
      %s386 = sphi 0, %s386
      %s388 = sphi 0, %s386
      %s389 = sphi 0, %s388
      %s403 = sphi 0, %s389
      %s407 = sphi 0, %s407
      %s409 = sphi 0, %s407
      %s410 = sphi 0, %s409
      %s424 = sphi 0, %s410
      %s430 = sphi 0, %s432
      %s433 = sphi 0, %s430
      %s434 = sphi 0, %s433
      %s450 = sphi 0, %s434
      %s456 = sphi 0, %s458
      %s459 = sphi 0, %s456
      %s460 = sphi 0, %s459
      %s476 = sphi 0, %s460
    $region4: #{tpu_custom_call.1} parent=1 // loop_header_branch
      %35 = sbr.rel (%p33) target = $region8
    $region5: #{tpu_custom_call.1} parent=1 // loop_body
      %s37 = ssub.s32 %s32, 1
      %s38 = ssub.s32 %s32, 2
      %s39 = sadd.s32 %s32, 1
      %s40 = ssub.s32 %s32, %s39
      %p41 = scmp.eq.s32.totalorder %s40, 0
      %s43 = sadd.s32 %s42, 1
      %s44 = scalar_select %p41, %s42, %s43
      %p47 = pneg %p41
      %p48 = scmp.eq.s32.totalorder %s32, 1
      %p49 = por %p47, %p48
      %p50 = scmp.ne.s32.totalorder %s42, %s45
      %p51 = scmp.eq.s32.totalorder %s32, 0
      %p52 = por %p50, %p51
      %p53 = scmp.ne.s32.totalorder %s42, %s45
      %p54 = scmp.eq.s32.totalorder %s37, 1
      %p55 = por %p53, %p54
      %p56 = scmp.ne.s32.totalorder %s45, %s46
      %p57 = scmp.eq.s32.totalorder %s37, 0
      %p58 = por %p56, %p57
      %p59 = scmp.ne.s32.totalorder %s45, %s46
      %p60 = scmp.eq.s32.totalorder %s38, 1
      %p61 = por %p59, %p60
      %p63 = scmp.ne.s32.totalorder %s46, %s62
      %p64 = scmp.eq.s32.totalorder %s38, 0
      %p65 = por %p63, %p64
      %s66 = ssub.s32 %s32, %s39
      %p67 = scmp.eq.s32.totalorder %s66, 0
      %s69 = sadd.s32 %s68, 1
      %s70 = scalar_select %p67, %s68, %s69
      %p73 = pneg %p67
      %p74 = scmp.eq.s32.totalorder %s32, 1
      %p75 = por %p73, %p74
      %p76 = scmp.ne.s32.totalorder %s68, %s71
      %p77 = scmp.eq.s32.totalorder %s32, 0
      %p78 = por %p76, %p77
      %p79 = scmp.ne.s32.totalorder %s68, %s71
      %p80 = scmp.eq.s32.totalorder %s37, 1
      %p81 = por %p79, %p80
      %p82 = scmp.ne.s32.totalorder %s71, %s72
      %p83 = scmp.eq.s32.totalorder %s37, 0
      %p84 = por %p82, %p83
      %p85 = scmp.ne.s32.totalorder %s71, %s72
      %p86 = scmp.eq.s32.totalorder %s38, 1
      %p87 = por %p85, %p86
      %p89 = scmp.ne.s32.totalorder %s72, %s88
      %p90 = scmp.eq.s32.totalorder %s38, 0
      %p91 = por %p89, %p90
      %s93 = sadd.s32 %s92, 1
      %p96 = scmp.eq.s32.totalorder %s32, 1
      %p97 = scmp.ne.s32.totalorder %s92, %s94
      %p98 = scmp.eq.s32.totalorder %s32, 0
      %p99 = por %p97, %p98
      %p100 = scmp.ne.s32.totalorder %s92, %s94
      %p101 = scmp.eq.s32.totalorder %s37, 1
      %p102 = por %p100, %p101
      %p103 = scmp.ne.s32.totalorder %s94, %s95
      %p104 = scmp.eq.s32.totalorder %s37, 0
      %p105 = por %p103, %p104
      %p106 = scmp.ne.s32.totalorder %s94, %s95
      %p107 = scmp.eq.s32.totalorder %s38, 1
      %p108 = por %p106, %p107
      %p110 = scmp.ne.s32.totalorder %s95, %s109
      %p111 = scmp.eq.s32.totalorder %s38, 0
      %p112 = por %p110, %p111
      %s114 = sadd.s32 %s113, 1
      %p117 = scmp.eq.s32.totalorder %s32, 1
      %p118 = scmp.ne.s32.totalorder %s113, %s115
      %p119 = scmp.eq.s32.totalorder %s32, 0
      %p120 = por %p118, %p119
      %p121 = scmp.ne.s32.totalorder %s113, %s115
      %p122 = scmp.eq.s32.totalorder %s37, 1
      %p123 = por %p121, %p122
      %p124 = scmp.ne.s32.totalorder %s115, %s116
      %p125 = scmp.eq.s32.totalorder %s37, 0
      %p126 = por %p124, %p125
      %p127 = scmp.ne.s32.totalorder %s115, %s116
      %p128 = scmp.eq.s32.totalorder %s38, 1
      %p129 = por %p127, %p128
      %p131 = scmp.ne.s32.totalorder %s116, %s130
      %p132 = scmp.eq.s32.totalorder %s38, 0
      %p133 = por %p131, %p132
      %s135 = sadd.s32 %s134, 1
      %p138 = scmp.eq.s32.totalorder %s32, 1
      %p139 = scmp.ne.s32.totalorder %s134, %s136
      %p140 = scmp.eq.s32.totalorder %s32, 0
      %p141 = por %p139, %p140
      %p142 = scmp.ne.s32.totalorder %s134, %s136
      %p143 = scmp.eq.s32.totalorder %s37, 1
      %p144 = por %p142, %p143
      %p145 = scmp.ne.s32.totalorder %s136, %s137
      %p146 = scmp.eq.s32.totalorder %s37, 0
      %p147 = por %p145, %p146
      %p148 = scmp.ne.s32.totalorder %s136, %s137
      %p149 = scmp.eq.s32.totalorder %s38, 1
      %p150 = por %p148, %p149
      %p152 = scmp.ne.s32.totalorder %s137, %s151
      %p153 = scmp.eq.s32.totalorder %s38, 0
      %p154 = por %p152, %p153
      %s156 = sadd.s32 %s155, 1
      %p159 = scmp.eq.s32.totalorder %s32, 1
      %p160 = scmp.ne.s32.totalorder %s155, %s157
      %p161 = scmp.eq.s32.totalorder %s32, 0
      %p162 = por %p160, %p161
      %p163 = scmp.ne.s32.totalorder %s155, %s157
      %p164 = scmp.eq.s32.totalorder %s37, 1
      %p165 = por %p163, %p164
      %p166 = scmp.ne.s32.totalorder %s157, %s158
      %p167 = scmp.eq.s32.totalorder %s37, 0
      %p168 = por %p166, %p167
      %p169 = scmp.ne.s32.totalorder %s157, %s158
      %p170 = scmp.eq.s32.totalorder %s38, 1
      %p171 = por %p169, %p170
      %p173 = scmp.ne.s32.totalorder %s158, %s172
      %p174 = scmp.eq.s32.totalorder %s38, 0
      %p175 = por %p173, %p174
      %s177 = sadd.s32 %s176, 1
      %p180 = scmp.eq.s32.totalorder %s32, 1
      %p181 = scmp.ne.s32.totalorder %s176, %s178
      %p182 = scmp.eq.s32.totalorder %s32, 0
      %p183 = por %p181, %p182
      %p184 = scmp.ne.s32.totalorder %s176, %s178
      %p185 = scmp.eq.s32.totalorder %s37, 1
      %p186 = por %p184, %p185
      %p187 = scmp.ne.s32.totalorder %s178, %s179
      %p188 = scmp.eq.s32.totalorder %s37, 0
      %p189 = por %p187, %p188
      %p190 = scmp.ne.s32.totalorder %s178, %s179
      %p191 = scmp.eq.s32.totalorder %s38, 1
      %p192 = por %p190, %p191
      %p194 = scmp.ne.s32.totalorder %s179, %s193
      %p195 = scmp.eq.s32.totalorder %s38, 0
      %p196 = por %p194, %p195
      %s198 = sadd.s32 %s197, 1
      %p201 = scmp.eq.s32.totalorder %s32, 1
      %p202 = scmp.ne.s32.totalorder %s197, %s199
      %p203 = scmp.eq.s32.totalorder %s32, 0
      %p204 = por %p202, %p203
      %p205 = scmp.ne.s32.totalorder %s197, %s199
      %p206 = scmp.eq.s32.totalorder %s37, 1
      %p207 = por %p205, %p206
      %p208 = scmp.ne.s32.totalorder %s199, %s200
      %p209 = scmp.eq.s32.totalorder %s37, 0
      %p210 = por %p208, %p209
      %p211 = scmp.ne.s32.totalorder %s199, %s200
      %p212 = scmp.eq.s32.totalorder %s38, 1
      %p213 = por %p211, %p212
      %p215 = scmp.ne.s32.totalorder %s200, %s214
      %p216 = scmp.eq.s32.totalorder %s38, 0
      %p217 = por %p215, %p216
      %s219 = sadd.s32 %s218, 1
      %p222 = scmp.eq.s32.totalorder %s32, 1
      %p223 = scmp.ne.s32.totalorder %s218, %s220
      %p224 = scmp.eq.s32.totalorder %s32, 0
      %p225 = por %p223, %p224
      %p226 = scmp.ne.s32.totalorder %s218, %s220
      %p227 = scmp.eq.s32.totalorder %s37, 1
      %p228 = por %p226, %p227
      %p229 = scmp.ne.s32.totalorder %s220, %s221
      %p230 = scmp.eq.s32.totalorder %s37, 0
      %p231 = por %p229, %p230
      %p232 = scmp.ne.s32.totalorder %s220, %s221
      %p233 = scmp.eq.s32.totalorder %s38, 1
      %p234 = por %p232, %p233
      %p236 = scmp.ne.s32.totalorder %s221, %s235
      %p237 = scmp.eq.s32.totalorder %s38, 0
      %p238 = por %p236, %p237
      %s240 = sadd.s32 %s239, 1
      %p243 = scmp.eq.s32.totalorder %s32, 1
      %p244 = scmp.ne.s32.totalorder %s239, %s241
      %p245 = scmp.eq.s32.totalorder %s32, 0
      %p246 = por %p244, %p245
      %p247 = scmp.ne.s32.totalorder %s239, %s241
      %p248 = scmp.eq.s32.totalorder %s37, 1
      %p249 = por %p247, %p248
      %p250 = scmp.ne.s32.totalorder %s241, %s242
      %p251 = scmp.eq.s32.totalorder %s37, 0
      %p252 = por %p250, %p251
      %p253 = scmp.ne.s32.totalorder %s241, %s242
      %p254 = scmp.eq.s32.totalorder %s38, 1
      %p255 = por %p253, %p254
      %p257 = scmp.ne.s32.totalorder %s242, %s256
      %p258 = scmp.eq.s32.totalorder %s38, 0
      %p259 = por %p257, %p258
      %s261 = sadd.s32 %s260, 1
      %p264 = scmp.eq.s32.totalorder %s32, 1
      %p265 = scmp.ne.s32.totalorder %s260, %s262
      %p266 = scmp.eq.s32.totalorder %s32, 0
      %p267 = por %p265, %p266
      %p268 = scmp.ne.s32.totalorder %s260, %s262
      %p269 = scmp.eq.s32.totalorder %s37, 1
      %p270 = por %p268, %p269
      %p271 = scmp.ne.s32.totalorder %s262, %s263
      %p272 = scmp.eq.s32.totalorder %s37, 0
      %p273 = por %p271, %p272
      %p274 = scmp.ne.s32.totalorder %s262, %s263
      %p275 = scmp.eq.s32.totalorder %s38, 1
      %p276 = por %p274, %p275
      %p278 = scmp.ne.s32.totalorder %s263, %s277
      %p279 = scmp.eq.s32.totalorder %s38, 0
      %p280 = por %p278, %p279
      %s282 = sadd.s32 %s281, 1
      %p285 = scmp.eq.s32.totalorder %s32, 1
      %p286 = scmp.ne.s32.totalorder %s281, %s283
      %p287 = scmp.eq.s32.totalorder %s32, 0
      %p288 = por %p286, %p287
      %p289 = scmp.ne.s32.totalorder %s281, %s283
      %p290 = scmp.eq.s32.totalorder %s37, 1
      %p291 = por %p289, %p290
      %p292 = scmp.ne.s32.totalorder %s283, %s284
      %p293 = scmp.eq.s32.totalorder %s37, 0
      %p294 = por %p292, %p293
      %p295 = scmp.ne.s32.totalorder %s283, %s284
      %p296 = scmp.eq.s32.totalorder %s38, 1
      %p297 = por %p295, %p296
      %p299 = scmp.ne.s32.totalorder %s284, %s298
      %p300 = scmp.eq.s32.totalorder %s38, 0
      %p301 = por %p299, %p300
      %s303 = sadd.s32 %s302, 1
      %p306 = scmp.eq.s32.totalorder %s32, 1
      %p307 = scmp.ne.s32.totalorder %s302, %s304
      %p308 = scmp.eq.s32.totalorder %s32, 0
      %p309 = por %p307, %p308
      %p310 = scmp.ne.s32.totalorder %s302, %s304
      %p311 = scmp.eq.s32.totalorder %s37, 1
      %p312 = por %p310, %p311
      %p313 = scmp.ne.s32.totalorder %s304, %s305
      %p314 = scmp.eq.s32.totalorder %s37, 0
      %p315 = por %p313, %p314
      %p316 = scmp.ne.s32.totalorder %s304, %s305
      %p317 = scmp.eq.s32.totalorder %s38, 1
      %p318 = por %p316, %p317
      %p320 = scmp.ne.s32.totalorder %s305, %s319
      %p321 = scmp.eq.s32.totalorder %s38, 0
      %p322 = por %p320, %p321
      %s324 = sadd.s32 %s323, 1
      %p327 = scmp.eq.s32.totalorder %s32, 1
      %p328 = scmp.ne.s32.totalorder %s323, %s325
      %p329 = scmp.eq.s32.totalorder %s32, 0
      %p330 = por %p328, %p329
      %p331 = scmp.ne.s32.totalorder %s323, %s325
      %p332 = scmp.eq.s32.totalorder %s37, 1
      %p333 = por %p331, %p332
      %p334 = scmp.ne.s32.totalorder %s325, %s326
      %p335 = scmp.eq.s32.totalorder %s37, 0
      %p336 = por %p334, %p335
      %p337 = scmp.ne.s32.totalorder %s325, %s326
      %p338 = scmp.eq.s32.totalorder %s38, 1
      %p339 = por %p337, %p338
      %p341 = scmp.ne.s32.totalorder %s326, %s340
      %p342 = scmp.eq.s32.totalorder %s38, 0
      %p343 = por %p341, %p342
      %s345 = sadd.s32 %s344, 1
      %p348 = scmp.eq.s32.totalorder %s32, 1
      %p349 = scmp.ne.s32.totalorder %s344, %s346
      %p350 = scmp.eq.s32.totalorder %s32, 0
      %p351 = por %p349, %p350
      %p352 = scmp.ne.s32.totalorder %s344, %s346
      %p353 = scmp.eq.s32.totalorder %s37, 1
      %p354 = por %p352, %p353
      %p355 = scmp.ne.s32.totalorder %s346, %s347
      %p356 = scmp.eq.s32.totalorder %s37, 0
      %p357 = por %p355, %p356
      %p358 = scmp.ne.s32.totalorder %s346, %s347
      %p359 = scmp.eq.s32.totalorder %s38, 1
      %p360 = por %p358, %p359
      %p362 = scmp.ne.s32.totalorder %s347, %s361
      %p363 = scmp.eq.s32.totalorder %s38, 0
      %p364 = por %p362, %p363
      %s366 = sadd.s32 %s365, 1
      %p369 = scmp.eq.s32.totalorder %s32, 1
      %p370 = scmp.ne.s32.totalorder %s365, %s367
      %p371 = scmp.eq.s32.totalorder %s32, 0
      %p372 = por %p370, %p371
      %p373 = scmp.ne.s32.totalorder %s365, %s367
      %p374 = scmp.eq.s32.totalorder %s37, 1
      %p375 = por %p373, %p374
      %p376 = scmp.ne.s32.totalorder %s367, %s368
      %p377 = scmp.eq.s32.totalorder %s37, 0
      %p378 = por %p376, %p377
      %p379 = scmp.ne.s32.totalorder %s367, %s368
      %p380 = scmp.eq.s32.totalorder %s38, 1
      %p381 = por %p379, %p380
      %p383 = scmp.ne.s32.totalorder %s368, %s382
      %p384 = scmp.eq.s32.totalorder %s38, 0
      %p385 = por %p383, %p384
      %s387 = sadd.s32 %s386, 1
      %p390 = scmp.eq.s32.totalorder %s32, 1
      %p391 = scmp.ne.s32.totalorder %s386, %s388
      %p392 = scmp.eq.s32.totalorder %s32, 0
      %p393 = por %p391, %p392
      %p394 = scmp.ne.s32.totalorder %s386, %s388
      %p395 = scmp.eq.s32.totalorder %s37, 1
      %p396 = por %p394, %p395
      %p397 = scmp.ne.s32.totalorder %s388, %s389
      %p398 = scmp.eq.s32.totalorder %s37, 0
      %p399 = por %p397, %p398
      %p400 = scmp.ne.s32.totalorder %s388, %s389
      %p401 = scmp.eq.s32.totalorder %s38, 1
      %p402 = por %p400, %p401
      %p404 = scmp.ne.s32.totalorder %s389, %s403
      %p405 = scmp.eq.s32.totalorder %s38, 0
      %p406 = por %p404, %p405
      %s408 = sadd.s32 %s407, 1
      %p411 = scmp.eq.s32.totalorder %s32, 1
      %p412 = scmp.ne.s32.totalorder %s407, %s409
      %p413 = scmp.eq.s32.totalorder %s32, 0
      %p414 = por %p412, %p413
      %p415 = scmp.ne.s32.totalorder %s407, %s409
      %p416 = scmp.eq.s32.totalorder %s37, 1
      %p417 = por %p415, %p416
      %p418 = scmp.ne.s32.totalorder %s409, %s410
      %p419 = scmp.eq.s32.totalorder %s37, 0
      %p420 = por %p418, %p419
      %p421 = scmp.ne.s32.totalorder %s409, %s410
      %p422 = scmp.eq.s32.totalorder %s38, 1
      %p423 = por %p421, %p422
      %p425 = scmp.ne.s32.totalorder %s410, %s424
      %p426 = scmp.eq.s32.totalorder %s38, 0
      %p427 = por %p425, %p426
      %s428 = ssub.s32 %s32, %s39
      %p429 = scmp.eq.s32.totalorder %s428, 0
      %s431 = sadd.s32 %s430, 1
      %s432 = scalar_select %p429, %s430, %s431
      %p435 = pneg %p429
      %p436 = scmp.eq.s32.totalorder %s32, 1
      %p437 = por %p435, %p436
      %p438 = scmp.ne.s32.totalorder %s430, %s433
      %p439 = scmp.eq.s32.totalorder %s32, 0
      %p440 = por %p438, %p439
      %p441 = scmp.ne.s32.totalorder %s430, %s433
      %p442 = scmp.eq.s32.totalorder %s37, 1
      %p443 = por %p441, %p442
      %p444 = scmp.ne.s32.totalorder %s433, %s434
      %p445 = scmp.eq.s32.totalorder %s37, 0
      %p446 = por %p444, %p445
      %p447 = scmp.ne.s32.totalorder %s433, %s434
      %p448 = scmp.eq.s32.totalorder %s38, 1
      %p449 = por %p447, %p448
      %p451 = scmp.ne.s32.totalorder %s434, %s450
      %p452 = scmp.eq.s32.totalorder %s38, 0
      %p453 = por %p451, %p452
      %s454 = ssub.s32 %s32, %s39
      %p455 = scmp.eq.s32.totalorder %s454, 0
      %s457 = sadd.s32 %s456, 1
      %s458 = scalar_select %p455, %s456, %s457
      %p461 = pneg %p455
      %p462 = scmp.eq.s32.totalorder %s32, 1
      %p463 = por %p461, %p462
      %p464 = scmp.ne.s32.totalorder %s456, %s459
      %p465 = scmp.eq.s32.totalorder %s32, 0
      %p466 = por %p464, %p465
      %p467 = scmp.ne.s32.totalorder %s456, %s459
      %p468 = scmp.eq.s32.totalorder %s37, 1
      %p469 = por %p467, %p468
      %p470 = scmp.ne.s32.totalorder %s459, %s460
      %p471 = scmp.eq.s32.totalorder %s37, 0
      %p472 = por %p470, %p471
      %p473 = scmp.ne.s32.totalorder %s459, %s460
      %p474 = scmp.eq.s32.totalorder %s38, 1
      %p475 = por %p473, %p474
      %p477 = scmp.ne.s32.totalorder %s460, %s476
      %p478 = scmp.eq.s32.totalorder %s38, 0
      %p479 = por %p477, %p478
      %p480 = scmp.le.s32.totalorder 1, %s32
      %p481 = scmp.lt.s32.totalorder %s32, 3
      %p482 = pnand %p480, %p481
      %p483 = pneg %p482
      // Predicated region
      $region9: #{tpu_custom_call.1} parent=5 // pred_check
        _
      $region10: #{tpu_custom_call.1} parent=5 // pred_check_branch
        %485 = sbr.rel (%p482) target = $region12
      $region11: #{tpu_custom_call.1} parent=5 // pred_region
        %s486 = ssub.s32 %s32, 1
        // Predicated region
        $region13: #{tpu_custom_call.1} parent=11 // pred_check
          %p487 = pneg %p105
        $region14: #{tpu_custom_call.1} parent=11 // pred_check_branch
          %489 = sbr.rel (%p487) target = $region16
        $region15: #{tpu_custom_call.1} parent=11 // pred_region
          _
        $region16: #{tpu_custom_call.1} parent=11 // pred_fallthru
          _
        // Predicated region
        $region17: #{tpu_custom_call.1} parent=11 // pred_check
          %p490 = pneg %p126
        $region18: #{tpu_custom_call.1} parent=11 // pred_check_branch
          %492 = sbr.rel (%p490) target = $region20
        $region19: #{tpu_custom_call.1} parent=11 // pred_region
          _
        $region20: #{tpu_custom_call.1} parent=11 // pred_fallthru
          _
        // Predicated region
        $region21: #{tpu_custom_call.1} parent=11 // pred_check
          %p493 = pneg %p147
        $region22: #{tpu_custom_call.1} parent=11 // pred_check_branch
          %495 = sbr.rel (%p493) target = $region24
        $region23: #{tpu_custom_call.1} parent=11 // pred_region
          _
        $region24: #{tpu_custom_call.1} parent=11 // pred_fallthru
          _
        // Predicated region
        $region25: #{tpu_custom_call.1} parent=11 // pred_check
          %p496 = pneg %p168
        $region26: #{tpu_custom_call.1} parent=11 // pred_check_branch
          %498 = sbr.rel (%p496) target = $region28
        $region27: #{tpu_custom_call.1} parent=11 // pred_region
          _
        $region28: #{tpu_custom_call.1} parent=11 // pred_fallthru
          _
        // Predicated region
        $region29: #{tpu_custom_call.1} parent=11 // pred_check
          %p499 = pneg %p189
        $region30: #{tpu_custom_call.1} parent=11 // pred_check_branch
          %501 = sbr.rel (%p499) target = $region32
        $region31: #{tpu_custom_call.1} parent=11 // pred_region
          _
        $region32: #{tpu_custom_call.1} parent=11 // pred_fallthru
          _
        // Predicated region
        $region33: #{tpu_custom_call.1} parent=11 // pred_check
          %p502 = pneg %p210
        $region34: #{tpu_custom_call.1} parent=11 // pred_check_branch
          %504 = sbr.rel (%p502) target = $region36
        $region35: #{tpu_custom_call.1} parent=11 // pred_region
          _
        $region36: #{tpu_custom_call.1} parent=11 // pred_fallthru
          _
        // Predicated region
        $region37: #{tpu_custom_call.1} parent=11 // pred_check
          %p505 = pneg %p231
        $region38: #{tpu_custom_call.1} parent=11 // pred_check_branch
          %507 = sbr.rel (%p505) target = $region40
        $region39: #{tpu_custom_call.1} parent=11 // pred_region
          _
        $region40: #{tpu_custom_call.1} parent=11 // pred_fallthru
          _
        // Predicated region
        $region41: #{tpu_custom_call.1} parent=11 // pred_check
          %p508 = pneg %p252
        $region42: #{tpu_custom_call.1} parent=11 // pred_check_branch
          %510 = sbr.rel (%p508) target = $region44
        $region43: #{tpu_custom_call.1} parent=11 // pred_region
          _
        $region44: #{tpu_custom_call.1} parent=11 // pred_fallthru
          _
        // Predicated region
        $region45: #{tpu_custom_call.1} parent=11 // pred_check
          %p511 = pneg %p273
        $region46: #{tpu_custom_call.1} parent=11 // pred_check_branch
          %513 = sbr.rel (%p511) target = $region48
        $region47: #{tpu_custom_call.1} parent=11 // pred_region
          _
        $region48: #{tpu_custom_call.1} parent=11 // pred_fallthru
          _
        // Predicated region
        $region49: #{tpu_custom_call.1} parent=11 // pred_check
          %p514 = pneg %p294
        $region50: #{tpu_custom_call.1} parent=11 // pred_check_branch
          %516 = sbr.rel (%p514) target = $region52
        $region51: #{tpu_custom_call.1} parent=11 // pred_region
          _
        $region52: #{tpu_custom_call.1} parent=11 // pred_fallthru
          _
        // Predicated region
        $region53: #{tpu_custom_call.1} parent=11 // pred_check
          %p517 = pneg %p315
        $region54: #{tpu_custom_call.1} parent=11 // pred_check_branch
          %519 = sbr.rel (%p517) target = $region56
        $region55: #{tpu_custom_call.1} parent=11 // pred_region
          _
        $region56: #{tpu_custom_call.1} parent=11 // pred_fallthru
          _
        // Predicated region
        $region57: #{tpu_custom_call.1} parent=11 // pred_check
          %p520 = pneg %p336
        $region58: #{tpu_custom_call.1} parent=11 // pred_check_branch
          %522 = sbr.rel (%p520) target = $region60
        $region59: #{tpu_custom_call.1} parent=11 // pred_region
          _
        $region60: #{tpu_custom_call.1} parent=11 // pred_fallthru
          _
        // Predicated region
        $region61: #{tpu_custom_call.1} parent=11 // pred_check
          %p523 = pneg %p357
        $region62: #{tpu_custom_call.1} parent=11 // pred_check_branch
          %525 = sbr.rel (%p523) target = $region64
        $region63: #{tpu_custom_call.1} parent=11 // pred_region
          _
        $region64: #{tpu_custom_call.1} parent=11 // pred_fallthru
          _
        // Predicated region
        $region65: #{tpu_custom_call.1} parent=11 // pred_check
          %p526 = pneg %p378
        $region66: #{tpu_custom_call.1} parent=11 // pred_check_branch
          %528 = sbr.rel (%p526) target = $region68
        $region67: #{tpu_custom_call.1} parent=11 // pred_region
          _
        $region68: #{tpu_custom_call.1} parent=11 // pred_fallthru
          _
        // Predicated region
        $region69: #{tpu_custom_call.1} parent=11 // pred_check
          %p529 = pneg %p399
        $region70: #{tpu_custom_call.1} parent=11 // pred_check_branch
          %531 = sbr.rel (%p529) target = $region72
        $region71: #{tpu_custom_call.1} parent=11 // pred_region
          _
        $region72: #{tpu_custom_call.1} parent=11 // pred_fallthru
          _
        // Predicated region
        $region73: #{tpu_custom_call.1} parent=11 // pred_check
          %p532 = pneg %p420
        $region74: #{tpu_custom_call.1} parent=11 // pred_check_branch
          %534 = sbr.rel (%p532) target = $region76
        $region75: #{tpu_custom_call.1} parent=11 // pred_region
          _
        $region76: #{tpu_custom_call.1} parent=11 // pred_fallthru
          _
      $region12: #{tpu_custom_call.1} parent=5 // pred_fallthru
        _
      %p535 = scmp.lt.s32.totalorder %s32, 2
      // Predicated region
      $region77: #{tpu_custom_call.1} parent=5 // pred_check
        %p536 = pneg %p535
      $region78: #{tpu_custom_call.1} parent=5 // pred_check_branch
        %538 = sbr.rel (%p536) target = $region80
      $region79: #{tpu_custom_call.1} parent=5 // pred_region
        // Predicated region
        $region81: #{tpu_custom_call.1} parent=79 // pred_check
          %p539 = pneg %p52
        $region82: #{tpu_custom_call.1} parent=79 // pred_check_branch
          %541 = sbr.rel (%p539) target = $region84
        $region83: #{tpu_custom_call.1} parent=79 // pred_region
          %p542 = scmp.lt.s32.totalorder %s32, 1
          %s543 = scalar_select %p542, %s32, 1
          %s544 = scalar_lea.vmem %s0, %s543
        $region84: #{tpu_custom_call.1} parent=79 // pred_fallthru
          _
        // Predicated region
        $region85: #{tpu_custom_call.1} parent=79 // pred_check
          %p545 = pneg %p78
        $region86: #{tpu_custom_call.1} parent=79 // pred_check_branch
          %547 = sbr.rel (%p545) target = $region88
        $region87: #{tpu_custom_call.1} parent=79 // pred_region
          %p548 = scmp.lt.s32.totalorder %s32, 1
          %s549 = scalar_select %p548, %s32, 1
          %s550 = smul.addr %s549, 8
          %s551 = scalar_lea.vmem %s1, %s550
        $region88: #{tpu_custom_call.1} parent=79 // pred_fallthru
          _
      $region80: #{tpu_custom_call.1} parent=5 // pred_fallthru
        _
      %p552 = scmp.le.s32.totalorder 1, %s32
      %p553 = scmp.lt.s32.totalorder %s32, 3
      %p554 = pnand %p552, %p553
      %p555 = pneg %p554
      // Predicated region
      $region89: #{tpu_custom_call.1} parent=5 // pred_check
        _
      $region90: #{tpu_custom_call.1} parent=5 // pred_check_branch
        %557 = sbr.rel (%p554) target = $region92
      $region91: #{tpu_custom_call.1} parent=5 // pred_region
        %s558 = ssub.s32 %s32, 1
        %p559 = scmp.lt.s32.totalorder %s37, 1
        %s560 = scalar_select %p559, %s37, 1
        %s561 = scalar_lea.vmem %s0, %s560
        %p562 = pneg %p58
        %p563 = pneg %p55
        %p564 = scmp.lt.s32.totalorder %s37, 1
        %s565 = scalar_select %p564, %s37, 1
        %s566 = smul.addr %s565, 8
        %s567 = scalar_lea.vmem %s1, %s566
        %p568 = pneg %p84
        %p569 = pneg %p81
        %p570 = pneg %p105
        %p571 = pneg %p102
        %p572 = pneg %p126
        %p573 = pneg %p123
        %p574 = pneg %p147
        %p575 = pneg %p144
        %p576 = pneg %p168
        %p577 = pneg %p165
        %p578 = pneg %p189
        %p579 = pneg %p186
        %p580 = pneg %p210
        %p581 = pneg %p207
        %p582 = pneg %p231
        %p583 = pneg %p228
        %p584 = pneg %p252
        %p585 = pneg %p249
        %p586 = pneg %p273
        %p587 = pneg %p270
        %p588 = pneg %p294
        %p589 = pneg %p291
        %p590 = pneg %p315
        %p591 = pneg %p312
        %p592 = pneg %p336
        %p593 = pneg %p333
        %p594 = pneg %p357
        %p595 = pneg %p354
        %p596 = pneg %p378
        %p597 = pneg %p375
        %p598 = pneg %p399
        %p599 = pneg %p396
        %p600 = pneg %p420
        %p601 = pneg %p417
        %p602 = pneg %p446
        %p603 = pneg %p443
        %s604 = sand.u32 %s433, 1
        %s605 = scalar_lea.sflag [#allocation3], %s604
        %s606 = sand.u32 %s433, 1
        %s607 = smul.addr %s606, 8
        %s608 = scalar_lea.vmem [#allocation2], %s607
        %p609 = pneg %p472
        %p610 = pneg %p469
        %s611 = sand.u32 %s459, 1
        %s612 = scalar_lea.sflag [#allocation5], %s611
        %s613 = sand.u32 %s459, 1
        %s614 = smul.addr %s613, 8
        %s615 = scalar_lea.vmem [#allocation4], %s614
        %p616 = scmp.lt.s32.totalorder %s37, 1
        %s617 = scalar_select %p616, %s37, 1
        %s618 = scalar_lea.vmem %s0, %s617
        %p619 = scmp.lt.s32.totalorder %s37, 1
        %s620 = scalar_select %p619, %s37, 1
        %s621 = smul.addr %s620, 8
        %s622 = scalar_lea.vmem %s1, %s621
        %v623 = vld [vmem:[%s618] sm:$0x1]
        %v624 = vld [vmem:[%s2] sm:$0xff]
        %v625 = vld [vmem:[%s2 + $0x8] sm:$0xff]
        %v626 = vld [vmem:[%s2 + $0x10] sm:$0xff]
        %v627 = vld [vmem:[%s2 + $0x18] sm:$0xff]
        %v628 = vld [vmem:[%s3] sm:$0x1]
        %vm629 = vcmask 15360
        %v631 = vsel %vm629, %v623, 0
        %v634 = vsel %vm629, %v624, 0
        %v637 = vsel %vm629, %v625, 0
        %v640 = vsel %vm629, %v626, 0
        %v643 = vsel %vm629, %v627, 0
        %645 = vmatpush.xpose.msra.mxu0 0.0
        %646 = vmatpush.xpose.msra.mxu0 0.0
        %647 = vmatpush.xpose.msra.mxu0 0.0
        %648 = vmatpush.xpose.msra.mxu0 0.0
        %649 = vmatpush.xpose.msra.mxu0 0.0
        %650 = vmatpush.xpose.msra.mxu0 0.0
        %651 = vmatpush.xpose.msra.mxu0 0.0
        %652 = vmatpush.xpose.msra.mxu0 0.0
        %653 = vmatpush.xpose.msra.mxu0 0.0
        %654 = vmatpush.xpose.msra.mxu0 0.0
        %655 = vmatpush.xpose.msra.mxu0 0.0
        %656 = vmatpush.xpose.msra.mxu0 0.0
        %657 = vmatpush.xpose.msra.mxu0 %v643
        %658 = vmatpush.xpose.msra.mxu0 %v640
        %659 = vmatpush.xpose.msra.mxu0 %v637
        %660 = vmatpush.xpose.msra.mxu0 %v634
        %661 = vmatmul.f32.gmra.mxu0 %v631
        %v662 = vpop.f32.mrf.mxu0
        %v663 = vadd.f32 %v628, %v662
        %664 = vdwg.mxu0
        %v665 = vld [vmem:[%s622] sm:$0x7f]
        %v666 = vld [vmem:[%s4] sm:$0xff]
        %v667 = vld [vmem:[%s4 + $0x8] sm:$0xff]
        %v668 = vld [vmem:[%s4 + $0x10] sm:$0xff]
        %v669 = vld [vmem:[%s4 + $0x18] sm:$0xff]
        %v670 = vld [vmem:[%s5] sm:$0x1]
        %v672 = vperm.slane %v670, 0
        %vm674 = vcmask 23552
        %v676 = vsel %vm674, %v665, 0
        %v679 = vsel %vm674, %v666, 0
        %v682 = vsel %vm674, %v667, 0
        %v685 = vsel %vm674, %v668, 0
        %v688 = vsel %vm674, %v669, 0
        %690 = vmatpush.xpose.msra.mxu0 0.0
        %691 = vmatpush.xpose.msra.mxu0 0.0
        %692 = vmatpush.xpose.msra.mxu0 0.0
        %693 = vmatpush.xpose.msra.mxu0 0.0
        %694 = vmatpush.xpose.msra.mxu0 0.0
        %695 = vmatpush.xpose.msra.mxu0 0.0
        %696 = vmatpush.xpose.msra.mxu0 0.0
        %697 = vmatpush.xpose.msra.mxu0 0.0
        %698 = vmatpush.xpose.msra.mxu0 0.0
        %699 = vmatpush.xpose.msra.mxu0 0.0
        %700 = vmatpush.xpose.msra.mxu0 0.0
        %701 = vmatpush.xpose.msra.mxu0 0.0
        %702 = vmatpush.xpose.msra.mxu0 %v688
        %703 = vmatpush.xpose.msra.mxu0 %v685
        %704 = vmatpush.xpose.msra.mxu0 %v682
        %705 = vmatpush.xpose.msra.mxu0 %v679
        %706 = vmatmul.f32.gmra.mxu0 %v676
        %v707 = vpop.f32.mrf.mxu0
        %v708 = vadd.f32 %v672, %v707
        %709 = vdwg.mxu0
        %v711 = vrot.slane %v708, 7
        %vm713 = vcmask 1040384
        %v714 = vsel %vm713, %v663, %v711
        %v715 = vld [vmem:[%s6] sm:$0xff]
        %v716 = vld [vmem:[%s6 + $0x8] sm:$0xff]
        %v717 = vld [vmem:[%s6 + $0x10] sm:$0xff]
        %v718 = vld [vmem:[%s6 + $0x18] sm:$0xff]
        %v719 = vld [vmem:[%s6 + $0x20] sm:$0xff]
        %v720 = vld [vmem:[%s6 + $0x28] sm:$0xff]
        %v721 = vld [vmem:[%s6 + $0x30] sm:$0xff]
        %v722 = vld [vmem:[%s6 + $0x38] sm:$0xff]
        %v723 = vld [vmem:[%s6 + $0x40] sm:$0xff]
        %v724 = vld [vmem:[%s6 + $0x48] sm:$0xff]
        %v725 = vld [vmem:[%s6 + $0x50] sm:$0xff]
        %v726 = vld [vmem:[%s6 + $0x58] sm:$0xff]
        %vm727 = vcmask 261120
        %v729 = vsel %vm727, %v714, 0
        %v732 = vsel %vm727, %v715, 0
        %v735 = vsel %vm727, %v716, 0
        %v738 = vsel %vm727, %v717, 0
        %v741 = vsel %vm727, %v718, 0
        %v744 = vsel %vm727, %v719, 0
        %v747 = vsel %vm727, %v720, 0
        %v750 = vsel %vm727, %v721, 0
        %v753 = vsel %vm727, %v722, 0
        %v756 = vsel %vm727, %v723, 0
        %v759 = vsel %vm727, %v724, 0
        %v762 = vsel %vm727, %v725, 0
        %v765 = vsel %vm727, %v726, 0
        %767 = vmatpush.xpose.msra.mxu0 0.0
        %768 = vmatpush.xpose.msra.mxu0 0.0
        %769 = vmatpush.xpose.msra.mxu0 0.0
        %770 = vmatpush.xpose.msra.mxu0 0.0
        %771 = vmatpush.xpose.msra.mxu0 %v765
        %772 = vmatpush.xpose.msra.mxu0 %v762
        %773 = vmatpush.xpose.msra.mxu0 %v759
        %774 = vmatpush.xpose.msra.mxu0 %v756
        %775 = vmatpush.xpose.msra.mxu0 %v753
        %776 = vmatpush.xpose.msra.mxu0 %v750
        %777 = vmatpush.xpose.msra.mxu0 %v747
        %778 = vmatpush.xpose.msra.mxu0 %v744
        %779 = vmatpush.xpose.msra.mxu0 %v741
        %780 = vmatpush.xpose.msra.mxu0 %v738
        %781 = vmatpush.xpose.msra.mxu0 %v735
        %782 = vmatpush.xpose.msra.mxu0 %v732
        %783 = vmatmul.f32.gmra.mxu0 %v729
        %v784 = vpop.f32.mrf.mxu0
        %v785 = vadd.f32 0.0, %v784
        %786 = vdwg.mxu0
        %788 = vrot.lane.b32.xlu0 %v785, 96
        %v789 = vpop.permute.xlu0 %788
        %vm790 = vcmask 64512
        %v791 = vsel %vm790, %v785, 0
        %v793 = vsel %vm790, %v789, 0
        %795 = vmatpush.xpose.msra.mxu0 0.0
        %796 = vmatpush.xpose.msra.mxu0 0.0
        %797 = vmatpush.xpose.msra.mxu0 0.0
        %798 = vmatpush.xpose.msra.mxu0 0.0
        %799 = vmatpush.xpose.msra.mxu0 0.0
        %800 = vmatpush.xpose.msra.mxu0 0.0
        %801 = vmatpush.xpose.msra.mxu0 0.0
        %802 = vmatpush.xpose.msra.mxu0 0.0
        %803 = vmatpush.xpose.msra.mxu0 0.0
        %804 = vmatpush.xpose.msra.mxu0 0.0
        %805 = vmatpush.xpose.msra.mxu0 0.0
        %806 = vmatpush.xpose.msra.mxu0 0.0
        %807 = vmatpush.xpose.msra.mxu0 0.0
        %808 = vmatpush.xpose.msra.mxu0 0.0
        %809 = vmatpush.xpose.msra.mxu0 0.0
        %810 = vmatpush.xpose.msra.mxu0 %v793
        %811 = vmatmul.f32.gmra.mxu0 %v791
        %v812 = vpop.f32.mrf.mxu0
        %v813 = vadd.f32 0.0, %v812
        %814 = vdwg.mxu0
        %v815 = vmul.f32 %v813, 0.35355338
        %v816 = vsel %vm790, %v815, -inf
        %817 = vmax.xlane.f32.xlu0 %v816
        %v818 = vpop.xlane.xlu0 %817
        %v819 = vsub.f32 %v815, %v818
        %v820 = vmul.f32 %v819, 1.442695
        %v821 = vpow.pop %v820
        %v822 = vsel %vm790, %v821, 0.0
        %823 = vadd.xlane.f32.xlu0 %v822
        %v824 = vpop.xlane.xlu0 %823
        %v825 = vrcp.pop %v824
        %v826 = vmul.f32 %v821, %v825
        %827 = vrot.lane.b32.xlu0 %v785, 64
        %v828 = vpop.permute.xlu0 %827
        %v831 = vsel %vm790, %v826, 0
        %833 = vmatpush.msra.mxu0 0.0
        %834 = vmatpush.msra.mxu0 0.0
        %835 = vmatpush.msra.mxu0 0.0
        %836 = vmatpush.msra.mxu0 0.0
        %837 = vmatpush.msra.mxu0 0.0
        %838 = vmatpush.msra.mxu0 0.0
        %839 = vmatpush.msra.mxu0 0.0
        %840 = vmatpush.msra.mxu0 0.0
        %841 = vmatpush.msra.mxu0 0.0
        %842 = vmatpush.msra.mxu0 0.0
        %843 = vmatpush.msra.mxu0 0.0
        %844 = vmatpush.msra.mxu0 0.0
        %845 = vmatpush.msra.mxu0 0.0
        %846 = vmatpush.msra.mxu0 0.0
        %847 = vmatpush.msra.mxu0 0.0
        %848 = vmatpush.msra.mxu0 %v828
        %849 = vmatmul.f32.gmra.mxu0 %v831
        %v850 = vpop.f32.mrf.mxu0
        %v851 = vadd.f32 0.0, %v850
        %852 = vdwg.mxu0
        %853 = vrot.lane.b32.xlu0 %v785, 120
        %v854 = vpop.permute.xlu0 %853
        %855 = vrot.lane.b32.xlu0 %v785, 88
        %v856 = vpop.permute.xlu0 %855
        %v857 = vsel %vm790, %v854, 0
        %v859 = vsel %vm790, %v856, 0
        %861 = vmatpush.xpose.msra.mxu0 0.0
        %862 = vmatpush.xpose.msra.mxu0 0.0
        %863 = vmatpush.xpose.msra.mxu0 0.0
        %864 = vmatpush.xpose.msra.mxu0 0.0
        %865 = vmatpush.xpose.msra.mxu0 0.0
        %866 = vmatpush.xpose.msra.mxu0 0.0
        %867 = vmatpush.xpose.msra.mxu0 0.0
        %868 = vmatpush.xpose.msra.mxu0 0.0
        %869 = vmatpush.xpose.msra.mxu0 0.0
        %870 = vmatpush.xpose.msra.mxu0 0.0
        %871 = vmatpush.xpose.msra.mxu0 0.0
        %872 = vmatpush.xpose.msra.mxu0 0.0
        %873 = vmatpush.xpose.msra.mxu0 0.0
        %874 = vmatpush.xpose.msra.mxu0 0.0
        %875 = vmatpush.xpose.msra.mxu0 0.0
        %876 = vmatpush.xpose.msra.mxu0 %v859
        %877 = vmatmul.f32.gmra.mxu0 %v857
        %v878 = vpop.f32.mrf.mxu0
        %v879 = vadd.f32 0.0, %v878
        %880 = vdwg.mxu0
        %v881 = vmul.f32 %v879, 0.35355338
        %v882 = vsel %vm790, %v881, -inf
        %883 = vmax.xlane.f32.xlu0 %v882
        %v884 = vpop.xlane.xlu0 %883
        %v885 = vsub.f32 %v881, %v884
        %v886 = vmul.f32 %v885, 1.442695
        %v887 = vpow.pop %v886
        %v888 = vsel %vm790, %v887, 0.0
        %889 = vadd.xlane.f32.xlu0 %v888
        %v890 = vpop.xlane.xlu0 %889
        %v891 = vrcp.pop %v890
        %v892 = vmul.f32 %v887, %v891
        %893 = vrot.lane.b32.xlu0 %v785, 56
        %v894 = vpop.permute.xlu0 %893
        %v897 = vsel %vm790, %v892, 0
        %899 = vmatpush.msra.mxu0 0.0
        %900 = vmatpush.msra.mxu0 0.0
        %901 = vmatpush.msra.mxu0 0.0
        %902 = vmatpush.msra.mxu0 0.0
        %903 = vmatpush.msra.mxu0 0.0
        %904 = vmatpush.msra.mxu0 0.0
        %905 = vmatpush.msra.mxu0 0.0
        %906 = vmatpush.msra.mxu0 0.0
        %907 = vmatpush.msra.mxu0 0.0
        %908 = vmatpush.msra.mxu0 0.0
        %909 = vmatpush.msra.mxu0 0.0
        %910 = vmatpush.msra.mxu0 0.0
        %911 = vmatpush.msra.mxu0 0.0
        %912 = vmatpush.msra.mxu0 0.0
        %913 = vmatpush.msra.mxu0 0.0
        %914 = vmatpush.msra.mxu0 %v894
        %915 = vmatmul.f32.gmra.mxu0 %v897
        %v916 = vpop.f32.mrf.mxu0
        %v917 = vadd.f32 0.0, %v916
        %918 = vdwg.mxu0
        %919 = vrot.lane.b32.xlu0 %v785, 112
        %v920 = vpop.permute.xlu0 %919
        %921 = vrot.lane.b32.xlu0 %v785, 80
        %v922 = vpop.permute.xlu0 %921
        %v923 = vsel %vm790, %v920, 0
        %v925 = vsel %vm790, %v922, 0
        %927 = vmatpush.xpose.msra.mxu0 0.0
        %928 = vmatpush.xpose.msra.mxu0 0.0
        %929 = vmatpush.xpose.msra.mxu0 0.0
        %930 = vmatpush.xpose.msra.mxu0 0.0
        %931 = vmatpush.xpose.msra.mxu0 0.0
        %932 = vmatpush.xpose.msra.mxu0 0.0
        %933 = vmatpush.xpose.msra.mxu0 0.0
        %934 = vmatpush.xpose.msra.mxu0 0.0
        %935 = vmatpush.xpose.msra.mxu0 0.0
        %936 = vmatpush.xpose.msra.mxu0 0.0
        %937 = vmatpush.xpose.msra.mxu0 0.0
        %938 = vmatpush.xpose.msra.mxu0 0.0
        %939 = vmatpush.xpose.msra.mxu0 0.0
        %940 = vmatpush.xpose.msra.mxu0 0.0
        %941 = vmatpush.xpose.msra.mxu0 0.0
        %942 = vmatpush.xpose.msra.mxu0 %v925
        %943 = vmatmul.f32.gmra.mxu0 %v923
        %v944 = vpop.f32.mrf.mxu0
        %v945 = vadd.f32 0.0, %v944
        %946 = vdwg.mxu0
        %v947 = vmul.f32 %v945, 0.35355338
        %v948 = vsel %vm790, %v947, -inf
        %949 = vmax.xlane.f32.xlu0 %v948
        %v950 = vpop.xlane.xlu0 %949
        %v951 = vsub.f32 %v947, %v950
        %v952 = vmul.f32 %v951, 1.442695
        %v953 = vpow.pop %v952
        %v954 = vsel %vm790, %v953, 0.0
        %955 = vadd.xlane.f32.xlu0 %v954
        %v956 = vpop.xlane.xlu0 %955
        %v957 = vrcp.pop %v956
        %v958 = vmul.f32 %v953, %v957
        %959 = vrot.lane.b32.xlu0 %v785, 48
        %v960 = vpop.permute.xlu0 %959
        %v963 = vsel %vm790, %v958, 0
        %965 = vmatpush.msra.mxu0 0.0
        %966 = vmatpush.msra.mxu0 0.0
        %967 = vmatpush.msra.mxu0 0.0
        %968 = vmatpush.msra.mxu0 0.0
        %969 = vmatpush.msra.mxu0 0.0
        %970 = vmatpush.msra.mxu0 0.0
        %971 = vmatpush.msra.mxu0 0.0
        %972 = vmatpush.msra.mxu0 0.0
        %973 = vmatpush.msra.mxu0 0.0
        %974 = vmatpush.msra.mxu0 0.0
        %975 = vmatpush.msra.mxu0 0.0
        %976 = vmatpush.msra.mxu0 0.0
        %977 = vmatpush.msra.mxu0 0.0
        %978 = vmatpush.msra.mxu0 0.0
        %979 = vmatpush.msra.mxu0 0.0
        %980 = vmatpush.msra.mxu0 %v960
        %981 = vmatmul.f32.gmra.mxu0 %v963
        %v982 = vpop.f32.mrf.mxu0
        %v983 = vadd.f32 0.0, %v982
        %984 = vdwg.mxu0
        %985 = vrot.lane.b32.xlu0 %v785, 104
        %v986 = vpop.permute.xlu0 %985
        %987 = vrot.lane.b32.xlu0 %v785, 72
        %v988 = vpop.permute.xlu0 %987
        %v989 = vsel %vm790, %v986, 0
        %v991 = vsel %vm790, %v988, 0
        %993 = vmatpush.xpose.msra.mxu0 0.0
        %994 = vmatpush.xpose.msra.mxu0 0.0
        %995 = vmatpush.xpose.msra.mxu0 0.0
        %996 = vmatpush.xpose.msra.mxu0 0.0
        %997 = vmatpush.xpose.msra.mxu0 0.0
        %998 = vmatpush.xpose.msra.mxu0 0.0
        %999 = vmatpush.xpose.msra.mxu0 0.0
        %1000 = vmatpush.xpose.msra.mxu0 0.0
        %1001 = vmatpush.xpose.msra.mxu0 0.0
        %1002 = vmatpush.xpose.msra.mxu0 0.0
        %1003 = vmatpush.xpose.msra.mxu0 0.0
        %1004 = vmatpush.xpose.msra.mxu0 0.0
        %1005 = vmatpush.xpose.msra.mxu0 0.0
        %1006 = vmatpush.xpose.msra.mxu0 0.0
        %1007 = vmatpush.xpose.msra.mxu0 0.0
        %1008 = vmatpush.xpose.msra.mxu0 %v991
        %1009 = vmatmul.f32.gmra.mxu0 %v989
        %v1010 = vpop.f32.mrf.mxu0
        %v1011 = vadd.f32 0.0, %v1010
        %1012 = vdwg.mxu0
        %v1013 = vmul.f32 %v1011, 0.35355338
        %v1014 = vsel %vm790, %v1013, -inf
        %1015 = vmax.xlane.f32.xlu0 %v1014
        %v1016 = vpop.xlane.xlu0 %1015
        %v1017 = vsub.f32 %v1013, %v1016
        %v1018 = vmul.f32 %v1017, 1.442695
        %v1019 = vpow.pop %v1018
        %v1020 = vsel %vm790, %v1019, 0.0
        %1021 = vadd.xlane.f32.xlu0 %v1020
        %v1022 = vpop.xlane.xlu0 %1021
        %v1023 = vrcp.pop %v1022
        %v1024 = vmul.f32 %v1019, %v1023
        %1025 = vrot.lane.b32.xlu0 %v785, 40
        %v1026 = vpop.permute.xlu0 %1025
        %v1029 = vsel %vm790, %v1024, 0
        %1031 = vmatpush.msra.mxu0 0.0
        %1032 = vmatpush.msra.mxu0 0.0
        %1033 = vmatpush.msra.mxu0 0.0
        %1034 = vmatpush.msra.mxu0 0.0
        %1035 = vmatpush.msra.mxu0 0.0
        %1036 = vmatpush.msra.mxu0 0.0
        %1037 = vmatpush.msra.mxu0 0.0
        %1038 = vmatpush.msra.mxu0 0.0
        %1039 = vmatpush.msra.mxu0 0.0
        %1040 = vmatpush.msra.mxu0 0.0
        %1041 = vmatpush.msra.mxu0 0.0
        %1042 = vmatpush.msra.mxu0 0.0
        %1043 = vmatpush.msra.mxu0 0.0
        %1044 = vmatpush.msra.mxu0 0.0
        %1045 = vmatpush.msra.mxu0 0.0
        %1046 = vmatpush.msra.mxu0 %v1026
        %1047 = vmatmul.f32.gmra.mxu0 %v1029
        %v1048 = vpop.f32.mrf.mxu0
        %v1049 = vadd.f32 0.0, %v1048
        %1050 = vdwg.mxu0
        %1052 = vrot.lane.b32.xlu0 %v917, 8
        %v1053 = vpop.permute.xlu0 %1052
        %1056 = vrot.lane.b32.xlu0 %v983, 16
        %v1057 = vpop.permute.xlu0 %1056
        %1060 = vrot.lane.b32.xlu0 %v1049, 24
        %v1061 = vpop.permute.xlu0 %1060
        %v1063 = vsel %vm790, %v851, %v1053
        %vm1064 = vcmask 130048
        %v1065 = vsel %vm1064, %v1063, %v1057
        %vm1066 = vcmask 195584
        %v1067 = vsel %vm1066, %v1065, %v1061
        %v1068 = vld [vmem:[%s7] sm:$0xff]
        %v1069 = vld [vmem:[%s7 + $0x8] sm:$0xff]
        %v1070 = vld [vmem:[%s7 + $0x10] sm:$0xff]
        %v1071 = vld [vmem:[%s7 + $0x18] sm:$0xff]
        %v1072 = vld [vmem:[%s8] sm:$0x1]
        %v1074 = vperm.slane %v1072, 0
        %v1077 = vsel %vm727, %v1067, 0
        %v1080 = vsel %vm727, %v1068, 0
        %v1083 = vsel %vm727, %v1069, 0
        %v1086 = vsel %vm727, %v1070, 0
        %v1089 = vsel %vm727, %v1071, 0
        %1091 = vmatpush.xpose.msra.mxu0 0.0
        %1092 = vmatpush.xpose.msra.mxu0 0.0
        %1093 = vmatpush.xpose.msra.mxu0 0.0
        %1094 = vmatpush.xpose.msra.mxu0 0.0
        %1095 = vmatpush.xpose.msra.mxu0 0.0
        %1096 = vmatpush.xpose.msra.mxu0 0.0
        %1097 = vmatpush.xpose.msra.mxu0 0.0
        %1098 = vmatpush.xpose.msra.mxu0 0.0
        %1099 = vmatpush.xpose.msra.mxu0 0.0
        %1100 = vmatpush.xpose.msra.mxu0 0.0
        %1101 = vmatpush.xpose.msra.mxu0 0.0
        %1102 = vmatpush.xpose.msra.mxu0 0.0
        %1103 = vmatpush.xpose.msra.mxu0 %v1089
        %1104 = vmatpush.xpose.msra.mxu0 %v1086
        %1105 = vmatpush.xpose.msra.mxu0 %v1083
        %1106 = vmatpush.xpose.msra.mxu0 %v1080
        %1107 = vmatmul.f32.gmra.mxu0 %v1077
        %v1108 = vpop.f32.mrf.mxu0
        %v1109 = vadd.f32 %v1074, %v1108
        %1110 = vdwg.mxu0
        %v1111 = vadd.f32 %v714, %v1109
        %v1112 = vsel %vm727, %v1111, 0.0
        %v1113 = vrot.slane %v1112, 4
        %v1114 = vadd.f32 %v1112, %v1113
        %v1115 = vrot.slane %v1114, 2
        %v1116 = vadd.f32 %v1114, %v1115
        %v1117 = vrot.slane %v1116, 1
        %v1118 = vadd.f32 %v1116, %v1117
        %v1119 = vrcp.pop 8.0
        %v1120 = vmul.f32 8.0, %v1119
        %v1121 = vsub.f32 1.0, %v1120
        %v1122 = vmul.f32 %v1119, %v1121
        %v1123 = vadd.f32 %v1119, %v1122
        %vm1124 = vweird.f32 %v1119
        %v1125 = vsel %vm1124, %v1119, %v1123
        %v1126 = vmul.f32 %v1118, %v1125
        %v1127 = vsub.f32 %v1111, %v1126
        %v1128 = vmul.f32 %v1127, %v1127
        %v1129 = vsel %vm727, %v1128, 0.0
        %v1130 = vrot.slane %v1129, 4
        %v1131 = vadd.f32 %v1129, %v1130
        %v1132 = vrot.slane %v1131, 2
        %v1133 = vadd.f32 %v1131, %v1132
        %v1134 = vrot.slane %v1133, 1
        %v1135 = vadd.f32 %v1133, %v1134
        %v1136 = vmul.f32 %v1135, %v1125
        %v1137 = vadd.f32 %v1136, 1e-05
        %v1138 = vrsqrt.pop %v1137
        %v1139 = vmul.f32 %v1138, %v1137
        %v1140 = vmul.f32 %v1139, %v1138
        %v1141 = vmul.f32 0.5, %v1140
        %v1142 = vsub.f32 1.5, %v1141
        %v1143 = vmul.f32 %v1138, %v1142
        %vm1144 = vweird.f32 %v1137
        %vm1145 = vweird.f32 %v1138
        %vm1146 = vmor %vm1144, %vm1145
        %v1147 = vsel %vm1146, %v1138, %v1143
        %v1148 = vmul.f32 %v1127, %v1147
        %v1149 = vld [vmem:[%s9] sm:$0x1]
        %v1151 = vperm.slane %v1149, 0
        %v1153 = vmul.f32 %v1148, %v1151
        %v1154 = vld [vmem:[%s10] sm:$0x1]
        %v1156 = vperm.slane %v1154, 0
        %v1158 = vadd.f32 %v1153, %v1156
        %v1159 = vld [vmem:[%s11] sm:$0xff]
        %v1160 = vld [vmem:[%s11 + $0x8] sm:$0xff]
        %v1161 = vld [vmem:[%s11 + $0x10] sm:$0xff]
        %v1162 = vld [vmem:[%s11 + $0x18] sm:$0xff]
        %v1163 = vld [vmem:[%s11 + $0x20] sm:$0xff]
        %v1164 = vld [vmem:[%s11 + $0x28] sm:$0xff]
        %v1165 = vld [vmem:[%s11 + $0x30] sm:$0xff]
        %v1166 = vld [vmem:[%s11 + $0x38] sm:$0xff]
        %v1167 = vld [vmem:[%s12] sm:$0x1]
        %v1169 = vperm.slane %v1167, 0
        %v1172 = vsel %vm727, %v1158, 0
        %v1175 = vsel %vm727, %v1159, 0
        %v1178 = vsel %vm727, %v1160, 0
        %v1181 = vsel %vm727, %v1161, 0
        %v1184 = vsel %vm727, %v1162, 0
        %v1187 = vsel %vm727, %v1163, 0
        %v1190 = vsel %vm727, %v1164, 0
        %v1193 = vsel %vm727, %v1165, 0
        %v1196 = vsel %vm727, %v1166, 0
        %1198 = vmatpush.xpose.msra.mxu0 0.0
        %1199 = vmatpush.xpose.msra.mxu0 0.0
        %1200 = vmatpush.xpose.msra.mxu0 0.0
        %1201 = vmatpush.xpose.msra.mxu0 0.0
        %1202 = vmatpush.xpose.msra.mxu0 0.0
        %1203 = vmatpush.xpose.msra.mxu0 0.0
        %1204 = vmatpush.xpose.msra.mxu0 0.0
        %1205 = vmatpush.xpose.msra.mxu0 0.0
        %1206 = vmatpush.xpose.msra.mxu0 %v1196
        %1207 = vmatpush.xpose.msra.mxu0 %v1193
        %1208 = vmatpush.xpose.msra.mxu0 %v1190
        %1209 = vmatpush.xpose.msra.mxu0 %v1187
        %1210 = vmatpush.xpose.msra.mxu0 %v1184
        %1211 = vmatpush.xpose.msra.mxu0 %v1181
        %1212 = vmatpush.xpose.msra.mxu0 %v1178
        %1213 = vmatpush.xpose.msra.mxu0 %v1175
        %1214 = vmatmul.f32.gmra.mxu0 %v1172
        %v1215 = vpop.f32.mrf.mxu0
        %v1216 = vadd.f32 %v1169, %v1215
        %1217 = vdwg.mxu0
        %v1218 = vmax.f32 %v1216, 0.0
        %v1219 = vld [vmem:[%s13] sm:$0xff]
        %v1220 = vld [vmem:[%s13 + $0x8] sm:$0xff]
        %v1221 = vld [vmem:[%s13 + $0x10] sm:$0xff]
        %v1222 = vld [vmem:[%s13 + $0x18] sm:$0xff]
        %v1223 = vld [vmem:[%s14] sm:$0x1]
        %v1225 = vperm.slane %v1223, 0
        %vm1227 = vcmask 523264
        %v1229 = vsel %vm1227, %v1218, 0
        %v1232 = vsel %vm1227, %v1219, 0
        %v1235 = vsel %vm1227, %v1220, 0
        %v1238 = vsel %vm1227, %v1221, 0
        %v1241 = vsel %vm1227, %v1222, 0
        %1243 = vmatpush.xpose.msra.mxu0 0.0
        %1244 = vmatpush.xpose.msra.mxu0 0.0
        %1245 = vmatpush.xpose.msra.mxu0 0.0
        %1246 = vmatpush.xpose.msra.mxu0 0.0
        %1247 = vmatpush.xpose.msra.mxu0 0.0
        %1248 = vmatpush.xpose.msra.mxu0 0.0
        %1249 = vmatpush.xpose.msra.mxu0 0.0
        %1250 = vmatpush.xpose.msra.mxu0 0.0
        %1251 = vmatpush.xpose.msra.mxu0 0.0
        %1252 = vmatpush.xpose.msra.mxu0 0.0
        %1253 = vmatpush.xpose.msra.mxu0 0.0
        %1254 = vmatpush.xpose.msra.mxu0 0.0
        %1255 = vmatpush.xpose.msra.mxu0 %v1241
        %1256 = vmatpush.xpose.msra.mxu0 %v1238
        %1257 = vmatpush.xpose.msra.mxu0 %v1235
        %1258 = vmatpush.xpose.msra.mxu0 %v1232
        %1259 = vmatmul.f32.gmra.mxu0 %v1229
        %v1260 = vpop.f32.mrf.mxu0
        %v1261 = vadd.f32 %v1225, %v1260
        %1262 = vdwg.mxu0
        %v1263 = vadd.f32 %v1158, %v1261
        %v1264 = vsel %vm727, %v1263, 0.0
        %v1265 = vrot.slane %v1264, 4
        %v1266 = vadd.f32 %v1264, %v1265
        %v1267 = vrot.slane %v1266, 2
        %v1268 = vadd.f32 %v1266, %v1267
        %v1269 = vrot.slane %v1268, 1
        %v1270 = vadd.f32 %v1268, %v1269
        %v1271 = vmul.f32 %v1270, %v1125
        %v1272 = vsub.f32 %v1263, %v1271
        %v1273 = vmul.f32 %v1272, %v1272
        %v1274 = vsel %vm727, %v1273, 0.0
        %v1275 = vrot.slane %v1274, 4
        %v1276 = vadd.f32 %v1274, %v1275
        %v1277 = vrot.slane %v1276, 2
        %v1278 = vadd.f32 %v1276, %v1277
        %v1279 = vrot.slane %v1278, 1
        %v1280 = vadd.f32 %v1278, %v1279
        %v1281 = vmul.f32 %v1280, %v1125
        %v1282 = vadd.f32 %v1281, 1e-05
        %v1283 = vrsqrt.pop %v1282
        %v1284 = vmul.f32 %v1283, %v1282
        %v1285 = vmul.f32 %v1284, %v1283
        %v1286 = vmul.f32 0.5, %v1285
        %v1287 = vsub.f32 1.5, %v1286
        %v1288 = vmul.f32 %v1283, %v1287
        %vm1289 = vweird.f32 %v1282
        %vm1290 = vweird.f32 %v1283
        %vm1291 = vmor %vm1289, %vm1290
        %v1292 = vsel %vm1291, %v1283, %v1288
        %v1293 = vmul.f32 %v1272, %v1292
        %v1294 = vld [vmem:[%s15] sm:$0x1]
        %v1296 = vperm.slane %v1294, 0
        %v1298 = vmul.f32 %v1293, %v1296
        %v1299 = vld [vmem:[%s16] sm:$0x1]
        %v1301 = vperm.slane %v1299, 0
        %v1303 = vadd.f32 %v1298, %v1301
        %s1304 = scalar_lea.vmem %s6, 96
        %v1305 = vld [vmem:[%s1304] sm:$0xff]
        %v1306 = vld [vmem:[%s1304 + $0x8] sm:$0xff]
        %v1307 = vld [vmem:[%s1304 + $0x10] sm:$0xff]
        %v1308 = vld [vmem:[%s1304 + $0x18] sm:$0xff]
        %v1309 = vld [vmem:[%s1304 + $0x20] sm:$0xff]
        %v1310 = vld [vmem:[%s1304 + $0x28] sm:$0xff]
        %v1311 = vld [vmem:[%s1304 + $0x30] sm:$0xff]
        %v1312 = vld [vmem:[%s1304 + $0x38] sm:$0xff]
        %v1313 = vld [vmem:[%s1304 + $0x40] sm:$0xff]
        %v1314 = vld [vmem:[%s1304 + $0x48] sm:$0xff]
        %v1315 = vld [vmem:[%s1304 + $0x50] sm:$0xff]
        %v1316 = vld [vmem:[%s1304 + $0x58] sm:$0xff]
        %v1318 = vsel %vm727, %v1303, 0
        %v1321 = vsel %vm727, %v1305, 0
        %v1324 = vsel %vm727, %v1306, 0
        %v1327 = vsel %vm727, %v1307, 0
        %v1330 = vsel %vm727, %v1308, 0
        %v1333 = vsel %vm727, %v1309, 0
        %v1336 = vsel %vm727, %v1310, 0
        %v1339 = vsel %vm727, %v1311, 0
        %v1342 = vsel %vm727, %v1312, 0
        %v1345 = vsel %vm727, %v1313, 0
        %v1348 = vsel %vm727, %v1314, 0
        %v1351 = vsel %vm727, %v1315, 0
        %v1354 = vsel %vm727, %v1316, 0
        %1356 = vmatpush.xpose.msra.mxu0 0.0
        %1357 = vmatpush.xpose.msra.mxu0 0.0
        %1358 = vmatpush.xpose.msra.mxu0 0.0
        %1359 = vmatpush.xpose.msra.mxu0 0.0
        %1360 = vmatpush.xpose.msra.mxu0 %v1354
        %1361 = vmatpush.xpose.msra.mxu0 %v1351
        %1362 = vmatpush.xpose.msra.mxu0 %v1348
        %1363 = vmatpush.xpose.msra.mxu0 %v1345
        %1364 = vmatpush.xpose.msra.mxu0 %v1342
        %1365 = vmatpush.xpose.msra.mxu0 %v1339
        %1366 = vmatpush.xpose.msra.mxu0 %v1336
        %1367 = vmatpush.xpose.msra.mxu0 %v1333
        %1368 = vmatpush.xpose.msra.mxu0 %v1330
        %1369 = vmatpush.xpose.msra.mxu0 %v1327
        %1370 = vmatpush.xpose.msra.mxu0 %v1324
        %1371 = vmatpush.xpose.msra.mxu0 %v1321
        %1372 = vmatmul.f32.gmra.mxu0 %v1318
        %v1373 = vpop.f32.mrf.mxu0
        %v1374 = vadd.f32 0.0, %v1373
        %1375 = vdwg.mxu0
        %1377 = vrot.lane.b32.xlu0 %v1374, 96
        %v1378 = vpop.permute.xlu0 %1377
        %v1379 = vsel %vm790, %v1374, 0
        %v1381 = vsel %vm790, %v1378, 0
        %1383 = vmatpush.xpose.msra.mxu0 0.0
        %1384 = vmatpush.xpose.msra.mxu0 0.0
        %1385 = vmatpush.xpose.msra.mxu0 0.0
        %1386 = vmatpush.xpose.msra.mxu0 0.0
        %1387 = vmatpush.xpose.msra.mxu0 0.0
        %1388 = vmatpush.xpose.msra.mxu0 0.0
        %1389 = vmatpush.xpose.msra.mxu0 0.0
        %1390 = vmatpush.xpose.msra.mxu0 0.0
        %1391 = vmatpush.xpose.msra.mxu0 0.0
        %1392 = vmatpush.xpose.msra.mxu0 0.0
        %1393 = vmatpush.xpose.msra.mxu0 0.0
        %1394 = vmatpush.xpose.msra.mxu0 0.0
        %1395 = vmatpush.xpose.msra.mxu0 0.0
        %1396 = vmatpush.xpose.msra.mxu0 0.0
        %1397 = vmatpush.xpose.msra.mxu0 0.0
        %1398 = vmatpush.xpose.msra.mxu0 %v1381
        %1399 = vmatmul.f32.gmra.mxu0 %v1379
        %v1400 = vpop.f32.mrf.mxu0
        %v1401 = vadd.f32 0.0, %v1400
        %1402 = vdwg.mxu0
        %v1403 = vmul.f32 %v1401, 0.35355338
        %v1404 = vsel %vm790, %v1403, -inf
        %1405 = vmax.xlane.f32.xlu0 %v1404
        %v1406 = vpop.xlane.xlu0 %1405
        %v1407 = vsub.f32 %v1403, %v1406
        %v1408 = vmul.f32 %v1407, 1.442695
        %v1409 = vpow.pop %v1408
        %v1410 = vsel %vm790, %v1409, 0.0
        %1411 = vadd.xlane.f32.xlu0 %v1410
        %v1412 = vpop.xlane.xlu0 %1411
        %v1413 = vrcp.pop %v1412
        %v1414 = vmul.f32 %v1409, %v1413
        %1415 = vrot.lane.b32.xlu0 %v1374, 64
        %v1416 = vpop.permute.xlu0 %1415
        %v1419 = vsel %vm790, %v1414, 0
        %1421 = vmatpush.msra.mxu0 0.0
        %1422 = vmatpush.msra.mxu0 0.0
        %1423 = vmatpush.msra.mxu0 0.0
        %1424 = vmatpush.msra.mxu0 0.0
        %1425 = vmatpush.msra.mxu0 0.0
        %1426 = vmatpush.msra.mxu0 0.0
        %1427 = vmatpush.msra.mxu0 0.0
        %1428 = vmatpush.msra.mxu0 0.0
        %1429 = vmatpush.msra.mxu0 0.0
        %1430 = vmatpush.msra.mxu0 0.0
        %1431 = vmatpush.msra.mxu0 0.0
        %1432 = vmatpush.msra.mxu0 0.0
        %1433 = vmatpush.msra.mxu0 0.0
        %1434 = vmatpush.msra.mxu0 0.0
        %1435 = vmatpush.msra.mxu0 0.0
        %1436 = vmatpush.msra.mxu0 %v1416
        %1437 = vmatmul.f32.gmra.mxu0 %v1419
        %v1438 = vpop.f32.mrf.mxu0
        %v1439 = vadd.f32 0.0, %v1438
        %1440 = vdwg.mxu0
        %1441 = vrot.lane.b32.xlu0 %v1374, 120
        %v1442 = vpop.permute.xlu0 %1441
        %1443 = vrot.lane.b32.xlu0 %v1374, 88
        %v1444 = vpop.permute.xlu0 %1443
        %v1445 = vsel %vm790, %v1442, 0
        %v1447 = vsel %vm790, %v1444, 0
        %1449 = vmatpush.xpose.msra.mxu0 0.0
        %1450 = vmatpush.xpose.msra.mxu0 0.0
        %1451 = vmatpush.xpose.msra.mxu0 0.0
        %1452 = vmatpush.xpose.msra.mxu0 0.0
        %1453 = vmatpush.xpose.msra.mxu0 0.0
        %1454 = vmatpush.xpose.msra.mxu0 0.0
        %1455 = vmatpush.xpose.msra.mxu0 0.0
        %1456 = vmatpush.xpose.msra.mxu0 0.0
        %1457 = vmatpush.xpose.msra.mxu0 0.0
        %1458 = vmatpush.xpose.msra.mxu0 0.0
        %1459 = vmatpush.xpose.msra.mxu0 0.0
        %1460 = vmatpush.xpose.msra.mxu0 0.0
        %1461 = vmatpush.xpose.msra.mxu0 0.0
        %1462 = vmatpush.xpose.msra.mxu0 0.0
        %1463 = vmatpush.xpose.msra.mxu0 0.0
        %1464 = vmatpush.xpose.msra.mxu0 %v1447
        %1465 = vmatmul.f32.gmra.mxu0 %v1445
        %v1466 = vpop.f32.mrf.mxu0
        %v1467 = vadd.f32 0.0, %v1466
        %1468 = vdwg.mxu0
        %v1469 = vmul.f32 %v1467, 0.35355338
        %v1470 = vsel %vm790, %v1469, -inf
        %1471 = vmax.xlane.f32.xlu0 %v1470
        %v1472 = vpop.xlane.xlu0 %1471
        %v1473 = vsub.f32 %v1469, %v1472
        %v1474 = vmul.f32 %v1473, 1.442695
        %v1475 = vpow.pop %v1474
        %v1476 = vsel %vm790, %v1475, 0.0
        %1477 = vadd.xlane.f32.xlu0 %v1476
        %v1478 = vpop.xlane.xlu0 %1477
        %v1479 = vrcp.pop %v1478
        %v1480 = vmul.f32 %v1475, %v1479
        %1481 = vrot.lane.b32.xlu0 %v1374, 56
        %v1482 = vpop.permute.xlu0 %1481
        %v1485 = vsel %vm790, %v1480, 0
        %1487 = vmatpush.msra.mxu0 0.0
        %1488 = vmatpush.msra.mxu0 0.0
        %1489 = vmatpush.msra.mxu0 0.0
        %1490 = vmatpush.msra.mxu0 0.0
        %1491 = vmatpush.msra.mxu0 0.0
        %1492 = vmatpush.msra.mxu0 0.0
        %1493 = vmatpush.msra.mxu0 0.0
        %1494 = vmatpush.msra.mxu0 0.0
        %1495 = vmatpush.msra.mxu0 0.0
        %1496 = vmatpush.msra.mxu0 0.0
        %1497 = vmatpush.msra.mxu0 0.0
        %1498 = vmatpush.msra.mxu0 0.0
        %1499 = vmatpush.msra.mxu0 0.0
        %1500 = vmatpush.msra.mxu0 0.0
        %1501 = vmatpush.msra.mxu0 0.0
        %1502 = vmatpush.msra.mxu0 %v1482
        %1503 = vmatmul.f32.gmra.mxu0 %v1485
        %v1504 = vpop.f32.mrf.mxu0
        %v1505 = vadd.f32 0.0, %v1504
        %1506 = vdwg.mxu0
        %1507 = vrot.lane.b32.xlu0 %v1374, 112
        %v1508 = vpop.permute.xlu0 %1507
        %1509 = vrot.lane.b32.xlu0 %v1374, 80
        %v1510 = vpop.permute.xlu0 %1509
        %v1511 = vsel %vm790, %v1508, 0
        %v1513 = vsel %vm790, %v1510, 0
        %1515 = vmatpush.xpose.msra.mxu0 0.0
        %1516 = vmatpush.xpose.msra.mxu0 0.0
        %1517 = vmatpush.xpose.msra.mxu0 0.0
        %1518 = vmatpush.xpose.msra.mxu0 0.0
        %1519 = vmatpush.xpose.msra.mxu0 0.0
        %1520 = vmatpush.xpose.msra.mxu0 0.0
        %1521 = vmatpush.xpose.msra.mxu0 0.0
        %1522 = vmatpush.xpose.msra.mxu0 0.0
        %1523 = vmatpush.xpose.msra.mxu0 0.0
        %1524 = vmatpush.xpose.msra.mxu0 0.0
        %1525 = vmatpush.xpose.msra.mxu0 0.0
        %1526 = vmatpush.xpose.msra.mxu0 0.0
        %1527 = vmatpush.xpose.msra.mxu0 0.0
        %1528 = vmatpush.xpose.msra.mxu0 0.0
        %1529 = vmatpush.xpose.msra.mxu0 0.0
        %1530 = vmatpush.xpose.msra.mxu0 %v1513
        %1531 = vmatmul.f32.gmra.mxu0 %v1511
        %v1532 = vpop.f32.mrf.mxu0
        %v1533 = vadd.f32 0.0, %v1532
        %1534 = vdwg.mxu0
        %v1535 = vmul.f32 %v1533, 0.35355338
        %v1536 = vsel %vm790, %v1535, -inf
        %1537 = vmax.xlane.f32.xlu0 %v1536
        %v1538 = vpop.xlane.xlu0 %1537
        %v1539 = vsub.f32 %v1535, %v1538
        %v1540 = vmul.f32 %v1539, 1.442695
        %v1541 = vpow.pop %v1540
        %v1542 = vsel %vm790, %v1541, 0.0
        %1543 = vadd.xlane.f32.xlu0 %v1542
        %v1544 = vpop.xlane.xlu0 %1543
        %v1545 = vrcp.pop %v1544
        %v1546 = vmul.f32 %v1541, %v1545
        %1547 = vrot.lane.b32.xlu0 %v1374, 48
        %v1548 = vpop.permute.xlu0 %1547
        %v1551 = vsel %vm790, %v1546, 0
        %1553 = vmatpush.msra.mxu0 0.0
        %1554 = vmatpush.msra.mxu0 0.0
        %1555 = vmatpush.msra.mxu0 0.0
        %1556 = vmatpush.msra.mxu0 0.0
        %1557 = vmatpush.msra.mxu0 0.0
        %1558 = vmatpush.msra.mxu0 0.0
        %1559 = vmatpush.msra.mxu0 0.0
        %1560 = vmatpush.msra.mxu0 0.0
        %1561 = vmatpush.msra.mxu0 0.0
        %1562 = vmatpush.msra.mxu0 0.0
        %1563 = vmatpush.msra.mxu0 0.0
        %1564 = vmatpush.msra.mxu0 0.0
        %1565 = vmatpush.msra.mxu0 0.0
        %1566 = vmatpush.msra.mxu0 0.0
        %1567 = vmatpush.msra.mxu0 0.0
        %1568 = vmatpush.msra.mxu0 %v1548
        %1569 = vmatmul.f32.gmra.mxu0 %v1551
        %v1570 = vpop.f32.mrf.mxu0
        %v1571 = vadd.f32 0.0, %v1570
        %1572 = vdwg.mxu0
        %1573 = vrot.lane.b32.xlu0 %v1374, 104
        %v1574 = vpop.permute.xlu0 %1573
        %1575 = vrot.lane.b32.xlu0 %v1374, 72
        %v1576 = vpop.permute.xlu0 %1575
        %v1577 = vsel %vm790, %v1574, 0
        %v1579 = vsel %vm790, %v1576, 0
        %1581 = vmatpush.xpose.msra.mxu0 0.0
        %1582 = vmatpush.xpose.msra.mxu0 0.0
        %1583 = vmatpush.xpose.msra.mxu0 0.0
        %1584 = vmatpush.xpose.msra.mxu0 0.0
        %1585 = vmatpush.xpose.msra.mxu0 0.0
        %1586 = vmatpush.xpose.msra.mxu0 0.0
        %1587 = vmatpush.xpose.msra.mxu0 0.0
        %1588 = vmatpush.xpose.msra.mxu0 0.0
        %1589 = vmatpush.xpose.msra.mxu0 0.0
        %1590 = vmatpush.xpose.msra.mxu0 0.0
        %1591 = vmatpush.xpose.msra.mxu0 0.0
        %1592 = vmatpush.xpose.msra.mxu0 0.0
        %1593 = vmatpush.xpose.msra.mxu0 0.0
        %1594 = vmatpush.xpose.msra.mxu0 0.0
        %1595 = vmatpush.xpose.msra.mxu0 0.0
        %1596 = vmatpush.xpose.msra.mxu0 %v1579
        %1597 = vmatmul.f32.gmra.mxu0 %v1577
        %v1598 = vpop.f32.mrf.mxu0
        %v1599 = vadd.f32 0.0, %v1598
        %1600 = vdwg.mxu0
        %v1601 = vmul.f32 %v1599, 0.35355338
        %v1602 = vsel %vm790, %v1601, -inf
        %1603 = vmax.xlane.f32.xlu0 %v1602
        %v1604 = vpop.xlane.xlu0 %1603
        %v1605 = vsub.f32 %v1601, %v1604
        %v1606 = vmul.f32 %v1605, 1.442695
        %v1607 = vpow.pop %v1606
        %v1608 = vsel %vm790, %v1607, 0.0
        %1609 = vadd.xlane.f32.xlu0 %v1608
        %v1610 = vpop.xlane.xlu0 %1609
        %v1611 = vrcp.pop %v1610
        %v1612 = vmul.f32 %v1607, %v1611
        %1613 = vrot.lane.b32.xlu0 %v1374, 40
        %v1614 = vpop.permute.xlu0 %1613
        %v1617 = vsel %vm790, %v1612, 0
        %1619 = vmatpush.msra.mxu0 0.0
        %1620 = vmatpush.msra.mxu0 0.0
        %1621 = vmatpush.msra.mxu0 0.0
        %1622 = vmatpush.msra.mxu0 0.0
        %1623 = vmatpush.msra.mxu0 0.0
        %1624 = vmatpush.msra.mxu0 0.0
        %1625 = vmatpush.msra.mxu0 0.0
        %1626 = vmatpush.msra.mxu0 0.0
        %1627 = vmatpush.msra.mxu0 0.0
        %1628 = vmatpush.msra.mxu0 0.0
        %1629 = vmatpush.msra.mxu0 0.0
        %1630 = vmatpush.msra.mxu0 0.0
        %1631 = vmatpush.msra.mxu0 0.0
        %1632 = vmatpush.msra.mxu0 0.0
        %1633 = vmatpush.msra.mxu0 0.0
        %1634 = vmatpush.msra.mxu0 %v1614
        %1635 = vmatmul.f32.gmra.mxu0 %v1617
        %v1636 = vpop.f32.mrf.mxu0
        %v1637 = vadd.f32 0.0, %v1636
        %1638 = vdwg.mxu0
        %1640 = vrot.lane.b32.xlu0 %v1505, 8
        %v1641 = vpop.permute.xlu0 %1640
        %1644 = vrot.lane.b32.xlu0 %v1571, 16
        %v1645 = vpop.permute.xlu0 %1644
        %1648 = vrot.lane.b32.xlu0 %v1637, 24
        %v1649 = vpop.permute.xlu0 %1648
        %v1651 = vsel %vm790, %v1439, %v1641
        %v1652 = vsel %vm1064, %v1651, %v1645
        %v1653 = vsel %vm1066, %v1652, %v1649
        %s1654 = scalar_lea.vmem %s7, 32
        %v1655 = vld [vmem:[%s1654] sm:$0xff]
        %v1656 = vld [vmem:[%s1654 + $0x8] sm:$0xff]
        %v1657 = vld [vmem:[%s1654 + $0x10] sm:$0xff]
        %v1658 = vld [vmem:[%s1654 + $0x18] sm:$0xff]
        %s1659 = scalar_lea.vmem %s8, 1
        %v1660 = vld [vmem:[%s1659] sm:$0x1]
        %v1662 = vperm.slane %v1660, 0
        %v1665 = vsel %vm727, %v1653, 0
        %v1668 = vsel %vm727, %v1655, 0
        %v1671 = vsel %vm727, %v1656, 0
        %v1674 = vsel %vm727, %v1657, 0
        %v1677 = vsel %vm727, %v1658, 0
        %1679 = vmatpush.xpose.msra.mxu0 0.0
        %1680 = vmatpush.xpose.msra.mxu0 0.0
        %1681 = vmatpush.xpose.msra.mxu0 0.0
        %1682 = vmatpush.xpose.msra.mxu0 0.0
        %1683 = vmatpush.xpose.msra.mxu0 0.0
        %1684 = vmatpush.xpose.msra.mxu0 0.0
        %1685 = vmatpush.xpose.msra.mxu0 0.0
        %1686 = vmatpush.xpose.msra.mxu0 0.0
        %1687 = vmatpush.xpose.msra.mxu0 0.0
        %1688 = vmatpush.xpose.msra.mxu0 0.0
        %1689 = vmatpush.xpose.msra.mxu0 0.0
        %1690 = vmatpush.xpose.msra.mxu0 0.0
        %1691 = vmatpush.xpose.msra.mxu0 %v1677
        %1692 = vmatpush.xpose.msra.mxu0 %v1674
        %1693 = vmatpush.xpose.msra.mxu0 %v1671
        %1694 = vmatpush.xpose.msra.mxu0 %v1668
        %1695 = vmatmul.f32.gmra.mxu0 %v1665
        %v1696 = vpop.f32.mrf.mxu0
        %v1697 = vadd.f32 %v1662, %v1696
        %1698 = vdwg.mxu0
        %v1699 = vadd.f32 %v1303, %v1697
        %v1700 = vsel %vm727, %v1699, 0.0
        %v1701 = vrot.slane %v1700, 4
        %v1702 = vadd.f32 %v1700, %v1701
        %v1703 = vrot.slane %v1702, 2
        %v1704 = vadd.f32 %v1702, %v1703
        %v1705 = vrot.slane %v1704, 1
        %v1706 = vadd.f32 %v1704, %v1705
        %v1707 = vmul.f32 %v1706, %v1125
        %v1708 = vsub.f32 %v1699, %v1707
        %v1709 = vmul.f32 %v1708, %v1708
        %v1710 = vsel %vm727, %v1709, 0.0
        %v1711 = vrot.slane %v1710, 4
        %v1712 = vadd.f32 %v1710, %v1711
        %v1713 = vrot.slane %v1712, 2
        %v1714 = vadd.f32 %v1712, %v1713
        %v1715 = vrot.slane %v1714, 1
        %v1716 = vadd.f32 %v1714, %v1715
        %v1717 = vmul.f32 %v1716, %v1125
        %v1718 = vadd.f32 %v1717, 1e-05
        %v1719 = vrsqrt.pop %v1718
        %v1720 = vmul.f32 %v1719, %v1718
        %v1721 = vmul.f32 %v1720, %v1719
        %v1722 = vmul.f32 0.5, %v1721
        %v1723 = vsub.f32 1.5, %v1722
        %v1724 = vmul.f32 %v1719, %v1723
        %vm1725 = vweird.f32 %v1718
        %vm1726 = vweird.f32 %v1719
        %vm1727 = vmor %vm1725, %vm1726
        %v1728 = vsel %vm1727, %v1719, %v1724
        %v1729 = vmul.f32 %v1708, %v1728
        %s1730 = scalar_lea.vmem %s9, 1
        %v1731 = vld [vmem:[%s1730] sm:$0x1]
        %v1733 = vperm.slane %v1731, 0
        %v1735 = vmul.f32 %v1729, %v1733
        %s1736 = scalar_lea.vmem %s10, 1
        %v1737 = vld [vmem:[%s1736] sm:$0x1]
        %v1739 = vperm.slane %v1737, 0
        %v1741 = vadd.f32 %v1735, %v1739
        %s1742 = scalar_lea.vmem %s11, 64
        %v1743 = vld [vmem:[%s1742] sm:$0xff]
        %v1744 = vld [vmem:[%s1742 + $0x8] sm:$0xff]
        %v1745 = vld [vmem:[%s1742 + $0x10] sm:$0xff]
        %v1746 = vld [vmem:[%s1742 + $0x18] sm:$0xff]
        %v1747 = vld [vmem:[%s1742 + $0x20] sm:$0xff]
        %v1748 = vld [vmem:[%s1742 + $0x28] sm:$0xff]
        %v1749 = vld [vmem:[%s1742 + $0x30] sm:$0xff]
        %v1750 = vld [vmem:[%s1742 + $0x38] sm:$0xff]
        %s1751 = scalar_lea.vmem %s12, 1
        %v1752 = vld [vmem:[%s1751] sm:$0x1]
        %v1754 = vperm.slane %v1752, 0
        %v1757 = vsel %vm727, %v1741, 0
        %v1760 = vsel %vm727, %v1743, 0
        %v1763 = vsel %vm727, %v1744, 0
        %v1766 = vsel %vm727, %v1745, 0
        %v1769 = vsel %vm727, %v1746, 0
        %v1772 = vsel %vm727, %v1747, 0
        %v1775 = vsel %vm727, %v1748, 0
        %v1778 = vsel %vm727, %v1749, 0
        %v1781 = vsel %vm727, %v1750, 0
        %1783 = vmatpush.xpose.msra.mxu0 0.0
        %1784 = vmatpush.xpose.msra.mxu0 0.0
        %1785 = vmatpush.xpose.msra.mxu0 0.0
        %1786 = vmatpush.xpose.msra.mxu0 0.0
        %1787 = vmatpush.xpose.msra.mxu0 0.0
        %1788 = vmatpush.xpose.msra.mxu0 0.0
        %1789 = vmatpush.xpose.msra.mxu0 0.0
        %1790 = vmatpush.xpose.msra.mxu0 0.0
        %1791 = vmatpush.xpose.msra.mxu0 %v1781
        %1792 = vmatpush.xpose.msra.mxu0 %v1778
        %1793 = vmatpush.xpose.msra.mxu0 %v1775
        %1794 = vmatpush.xpose.msra.mxu0 %v1772
        %1795 = vmatpush.xpose.msra.mxu0 %v1769
        %1796 = vmatpush.xpose.msra.mxu0 %v1766
        %1797 = vmatpush.xpose.msra.mxu0 %v1763
        %1798 = vmatpush.xpose.msra.mxu0 %v1760
        %1799 = vmatmul.f32.gmra.mxu0 %v1757
        %v1800 = vpop.f32.mrf.mxu0
        %v1801 = vadd.f32 %v1754, %v1800
        %1802 = vdwg.mxu0
        %v1803 = vmax.f32 %v1801, 0.0
        %s1804 = scalar_lea.vmem %s13, 32
        %v1805 = vld [vmem:[%s1804] sm:$0xff]
        %v1806 = vld [vmem:[%s1804 + $0x8] sm:$0xff]
        %v1807 = vld [vmem:[%s1804 + $0x10] sm:$0xff]
        %v1808 = vld [vmem:[%s1804 + $0x18] sm:$0xff]
        %s1809 = scalar_lea.vmem %s14, 1
        %v1810 = vld [vmem:[%s1809] sm:$0x1]
        %v1812 = vperm.slane %v1810, 0
        %v1815 = vsel %vm1227, %v1803, 0
        %v1818 = vsel %vm1227, %v1805, 0
        %v1821 = vsel %vm1227, %v1806, 0
        %v1824 = vsel %vm1227, %v1807, 0
        %v1827 = vsel %vm1227, %v1808, 0
        %1829 = vmatpush.xpose.msra.mxu0 0.0
        %1830 = vmatpush.xpose.msra.mxu0 0.0
        %1831 = vmatpush.xpose.msra.mxu0 0.0
        %1832 = vmatpush.xpose.msra.mxu0 0.0
        %1833 = vmatpush.xpose.msra.mxu0 0.0
        %1834 = vmatpush.xpose.msra.mxu0 0.0
        %1835 = vmatpush.xpose.msra.mxu0 0.0
        %1836 = vmatpush.xpose.msra.mxu0 0.0
        %1837 = vmatpush.xpose.msra.mxu0 0.0
        %1838 = vmatpush.xpose.msra.mxu0 0.0
        %1839 = vmatpush.xpose.msra.mxu0 0.0
        %1840 = vmatpush.xpose.msra.mxu0 0.0
        %1841 = vmatpush.xpose.msra.mxu0 %v1827
        %1842 = vmatpush.xpose.msra.mxu0 %v1824
        %1843 = vmatpush.xpose.msra.mxu0 %v1821
        %1844 = vmatpush.xpose.msra.mxu0 %v1818
        %1845 = vmatmul.f32.gmra.mxu0 %v1815
        %v1846 = vpop.f32.mrf.mxu0
        %v1847 = vadd.f32 %v1812, %v1846
        %1848 = vdwg.mxu0
        %v1849 = vadd.f32 %v1741, %v1847
        %v1850 = vsel %vm727, %v1849, 0.0
        %v1851 = vrot.slane %v1850, 4
        %v1852 = vadd.f32 %v1850, %v1851
        %v1853 = vrot.slane %v1852, 2
        %v1854 = vadd.f32 %v1852, %v1853
        %v1855 = vrot.slane %v1854, 1
        %v1856 = vadd.f32 %v1854, %v1855
        %v1857 = vmul.f32 %v1856, %v1125
        %v1858 = vsub.f32 %v1849, %v1857
        %v1859 = vmul.f32 %v1858, %v1858
        %v1860 = vsel %vm727, %v1859, 0.0
        %v1861 = vrot.slane %v1860, 4
        %v1862 = vadd.f32 %v1860, %v1861
        %v1863 = vrot.slane %v1862, 2
        %v1864 = vadd.f32 %v1862, %v1863
        %v1865 = vrot.slane %v1864, 1
        %v1866 = vadd.f32 %v1864, %v1865
        %v1867 = vmul.f32 %v1866, %v1125
        %v1868 = vadd.f32 %v1867, 1e-05
        %v1869 = vrsqrt.pop %v1868
        %v1870 = vmul.f32 %v1869, %v1868
        %v1871 = vmul.f32 %v1870, %v1869
        %v1872 = vmul.f32 0.5, %v1871
        %v1873 = vsub.f32 1.5, %v1872
        %v1874 = vmul.f32 %v1869, %v1873
        %vm1875 = vweird.f32 %v1868
        %vm1876 = vweird.f32 %v1869
        %vm1877 = vmor %vm1875, %vm1876
        %v1878 = vsel %vm1877, %v1869, %v1874
        %v1879 = vmul.f32 %v1858, %v1878
        %s1880 = scalar_lea.vmem %s15, 1
        %v1881 = vld [vmem:[%s1880] sm:$0x1]
        %v1883 = vperm.slane %v1881, 0
        %v1885 = vmul.f32 %v1879, %v1883
        %s1886 = scalar_lea.vmem %s16, 1
        %v1887 = vld [vmem:[%s1886] sm:$0x1]
        %v1889 = vperm.slane %v1887, 0
        %v1891 = vadd.f32 %v1885, %v1889
        %1892 = vst.msk [vmem:[%s608] sm:$0xff] %vm727, %v1891
        %v1893 = vld [vmem:[%s17] sm:$0xff]
        %v1894 = vld [vmem:[%s17 + $0x8] sm:$0xff]
        %v1895 = vld [vmem:[%s17 + $0x10] sm:$0xff]
        %v1896 = vld [vmem:[%s17 + $0x18] sm:$0xff]
        %v1897 = vld [vmem:[%s17 + $0x20] sm:$0xff]
        %v1898 = vld [vmem:[%s17 + $0x28] sm:$0xff]
        %v1899 = vld [vmem:[%s17 + $0x30] sm:$0xff]
        %v1900 = vld [vmem:[%s17 + $0x38] sm:$0xff]
        %v1902 = vsel %vm727, %v1891, 0
        %v1905 = vsel %vm727, %v1893, 0
        %v1908 = vsel %vm727, %v1894, 0
        %v1911 = vsel %vm727, %v1895, 0
        %v1914 = vsel %vm727, %v1896, 0
        %v1917 = vsel %vm727, %v1897, 0
        %v1920 = vsel %vm727, %v1898, 0
        %v1923 = vsel %vm727, %v1899, 0
        %v1926 = vsel %vm727, %v1900, 0
        %1928 = vmatpush.xpose.msra.mxu0 0.0
        %1929 = vmatpush.xpose.msra.mxu0 0.0
        %1930 = vmatpush.xpose.msra.mxu0 0.0
        %1931 = vmatpush.xpose.msra.mxu0 0.0
        %1932 = vmatpush.xpose.msra.mxu0 0.0
        %1933 = vmatpush.xpose.msra.mxu0 0.0
        %1934 = vmatpush.xpose.msra.mxu0 0.0
        %1935 = vmatpush.xpose.msra.mxu0 0.0
        %1936 = vmatpush.xpose.msra.mxu0 %v1926
        %1937 = vmatpush.xpose.msra.mxu0 %v1923
        %1938 = vmatpush.xpose.msra.mxu0 %v1920
        %1939 = vmatpush.xpose.msra.mxu0 %v1917
        %1940 = vmatpush.xpose.msra.mxu0 %v1914
        %1941 = vmatpush.xpose.msra.mxu0 %v1911
        %1942 = vmatpush.xpose.msra.mxu0 %v1908
        %1943 = vmatpush.xpose.msra.mxu0 %v1905
        %1944 = vmatmul.f32.gmra.mxu0 %v1902
        %v1945 = vpop.f32.mrf.mxu0
        %v1946 = vadd.f32 0.0, %v1945
        %1947 = vdwg.mxu0
        %1948 = vst.msk [vmem:[%s615] sm:$0xff] %vm1227, %v1946
        %s1949 = sand.u32 %s433, 1
        %s1950 = scalar_lea.sflag [#allocation3], %s1949
        %s1951 = sand.u32 %s433, 1
        %s1952 = smul.addr %s1951, 8
        %s1953 = scalar_lea.vmem [#allocation2], %s1952
        %s1954 = sand.u32 %s459, 1
        %s1955 = scalar_lea.sflag [#allocation5], %s1954
        %s1956 = sand.u32 %s459, 1
        %s1957 = smul.addr %s1956, 8
        %s1958 = scalar_lea.vmem [#allocation4], %s1957
        // Predicated region
        $region93: #{tpu_custom_call.1} parent=91 // pred_check
          %p1959 = pneg %p443
        $region94: #{tpu_custom_call.1} parent=91 // pred_check_branch
          %1961 = sbr.rel (%p1959) target = $region96
        $region95: #{tpu_custom_call.1} parent=91 // pred_region
          %1963 = vsyncadd %s1950, 0
          %s1964 = smul.addr %s37, 8
          %s1965 = scalar_lea.hbm %s18, %s1964
          %s1967 = sshll.u32 %s1953, 4
          %s1968 = int_to_ptr.vmem [resolvable:$true] %s1967
          %s1969 = sshll.u32 %s1965, 4
          %s1970 = int_to_ptr.hbm [resolvable:$true] %s1969
          %1972 = dma.vmem_to_hbm [thread:$0]  %s1968, 128, %s1970, %s1950
        $region96: #{tpu_custom_call.1} parent=91 // pred_fallthru
          _
        // Predicated region
        $region97: #{tpu_custom_call.1} parent=91 // pred_check
          %p1973 = pneg %p469
        $region98: #{tpu_custom_call.1} parent=91 // pred_check_branch
          %1975 = sbr.rel (%p1973) target = $region100
        $region99: #{tpu_custom_call.1} parent=91 // pred_region
          %1977 = vsyncadd %s1955, 0
          %s1978 = smul.addr %s37, 8
          %s1979 = scalar_lea.hbm %s19, %s1978
          %s1981 = sshll.u32 %s1958, 4
          %s1982 = int_to_ptr.vmem [resolvable:$true] %s1981
          %s1983 = sshll.u32 %s1979, 4
          %s1984 = int_to_ptr.hbm [resolvable:$true] %s1983
          %1986 = dma.vmem_to_hbm [thread:$0]  %s1982, 128, %s1984, %s1955
        $region100: #{tpu_custom_call.1} parent=91 // pred_fallthru
          _
      $region92: #{tpu_custom_call.1} parent=5 // pred_fallthru
        _
      %p1987 = scmp.le.s32.totalorder 2, %s32
      // Predicated region
      $region101: #{tpu_custom_call.1} parent=5 // pred_check
        %p1988 = pneg %p1987
      $region102: #{tpu_custom_call.1} parent=5 // pred_check_branch
        %1990 = sbr.rel (%p1988) target = $region104
      $region103: #{tpu_custom_call.1} parent=5 // pred_region
        %s1991 = ssub.s32 %s32, 2
        // Predicated region
        $region105: #{tpu_custom_call.1} parent=103 // pred_check
          %p1992 = pneg %p449
        $region106: #{tpu_custom_call.1} parent=103 // pred_check_branch
          %1994 = sbr.rel (%p1992) target = $region108
        $region107: #{tpu_custom_call.1} parent=103 // pred_region
          %s1995 = sand.u32 %s434, 1
          %s1996 = scalar_lea.sflag [#allocation3], %s1995
          %s1997 = sand.u32 %s434, 1
          %s1998 = smul.addr %s1997, 8
          %s1999 = scalar_lea.vmem [#allocation2], %s1998
          %2001 = dma.done %s1996, 128
        $region108: #{tpu_custom_call.1} parent=103 // pred_fallthru
          _
        // Predicated region
        $region109: #{tpu_custom_call.1} parent=103 // pred_check
          %p2002 = pneg %p475
        $region110: #{tpu_custom_call.1} parent=103 // pred_check_branch
          %2004 = sbr.rel (%p2002) target = $region112
        $region111: #{tpu_custom_call.1} parent=103 // pred_region
          %s2005 = sand.u32 %s460, 1
          %s2006 = scalar_lea.sflag [#allocation5], %s2005
          %s2007 = sand.u32 %s460, 1
          %s2008 = smul.addr %s2007, 8
          %s2009 = scalar_lea.vmem [#allocation4], %s2008
          %2011 = dma.done %s2006, 128
        $region112: #{tpu_custom_call.1} parent=103 // pred_fallthru
          _
      $region104: #{tpu_custom_call.1} parent=5 // pred_fallthru
        _
    $region6: #{tpu_custom_call.1} parent=1 // loop_footer
      %s36 = sadd.s32 1, %s32
    $region7: #{tpu_custom_call.1} parent=1 // loop_footer_branch
      %31 = sbr.rel target = $region3
    $region8: #{tpu_custom_call.1} parent=1 // loop_exit
      _
    %2012 = vsyncpa [#allocation3], 1
    %s2013 = scalar_lea.sflag [#allocation3], 1
    %2014 = vsyncpa %s2013, 1
    %2015 = vsyncpa [#allocation5], 1
    %s2016 = scalar_lea.sflag [#allocation5], 1
    %2017 = vsyncpa %s2016, 1

</llo_original>
